<compile_context>
chip_gen: v7x
topology: tpu7x:2x2x1
jax: 0.10.0
libtpu: 0.0.40
codegen_flags: <defaults>
</compile_context>

<pallas_src>
import functools

import jax
import jax.numpy as jnp
from jax.experimental import pallas as pl
from jax.experimental.pallas import tpu as pltpu

INV_SQRT2 = 0.7071067811865476
LN_EPS = 1e-5


def _round_up(x, m):
    return (x + m - 1) // m * m


def _next_pow2(x):
    p = 1
    while p < x:
        p *= 2
    return p


def _vmem_capacity_bytes():
    try:
        info = pltpu.get_tpu_info()
        cap = getattr(info, "vmem_capacity_bytes", None)
        if cap:
            return int(cap)
    except Exception:
        pass
    return 64 * 1024 * 1024          # conservative (v7x per-TensorCore)


# --------------------------------------------------------------------------
# kernel
# --------------------------------------------------------------------------
def rel_pos_emb_kernel(x_ref, w_ref, b_ref, g_ref, beta_ref, mask_ref,
                       o_ref, acc_ref, *, c_real):
    """One (batch, time-tile, tap-chunk) grid step.

    x_ref    : (1, T_in_pad, C_pack)       channel-last padded input (stream dtype)
    w_ref    : (KC, n_packs, PACK, PACK)   per-tap per-pack block-diag weights
    b_ref    : (1, C_pack) f32             conv bias       (zero on padded lanes)
    g_ref    : (1, C_pack) f32             layernorm gamma (zero on padded lanes)
    beta_ref : (1, C_pack) f32             layernorm beta  (zero on padded lanes)
    mask_ref : (1, C_pack) f32             1.0 on real channel lanes, 0.0 on pad
    o_ref    : (1, T_blk, C_pack)          output time tile
    acc_ref  : (T_blk, C_pack) f32         conv accumulator (VMEM scratch)
    """
    ti = pl.program_id(1)
    kc = pl.program_id(2)
    n_kc = pl.num_programs(2)

    kc_size, n_packs, pack_w, _ = w_ref.shape
    t_blk = o_ref.shape[1]

    # t_blk and kc_size are multiples of 8 -> the dynamic sublane slice below
    # starts on an (8,128)-aligned boundary.
    base = pl.multiple_of(ti * t_blk + kc * kc_size, 8)

    @pl.when(kc == 0)
    def _():
        acc_ref[...] = jnp.zeros_like(acc_ref)

    # Grouped conv for this chunk of taps.  Per 128-lane pack: load the
    # (t_blk + kc_size)-row window once, derive the per-tap shifted operands
    # as static slices of that value, accumulate the kc_size tap matmuls in a
    # local f32 value and do a single read-modify-write of the accumulator.
    for pk in range(n_packs):
        win = x_ref[0, pl.ds(base, t_blk + kc_size), pl.ds(pk * pack_w, pack_w)]
        acc = jnp.dot(win[0:t_blk, :], w_ref[0, pk],
                      preferred_element_type=jnp.float32)
        for p in range(1, kc_size):
            acc = acc + jnp.dot(win[p:p + t_blk, :], w_ref[p, pk],
                                preferred_element_type=jnp.float32)
        # TODO(synk): on v7x, fold the per-tap reduction into the MXU result
        # buffer (pltpu.matmul_acc_lhs / matmul_pop) instead of VPU adds.
        acc_ref[:, pl.ds(pk * pack_w, pack_w)] += acc

    # Finalize on the last tap chunk: bias + LayerNorm + exact GELU + store.
    @pl.when(kc == n_kc - 1)
    def _():
        acc = acc_ref[...] + b_ref[...]          # padded lanes stay exactly 0
        inv_c = 1.0 / c_real
        mean = jnp.sum(acc, axis=-1, keepdims=True) * inv_c
        centered = (acc - mean) * mask_ref[...]  # mask padded lanes
        var = jnp.sum(centered * centered, axis=-1, keepdims=True) * inv_c
        y = centered * jax.lax.rsqrt(var + LN_EPS) * g_ref[...] + beta_ref[...]
        out = 0.5 * y * (1.0 + jax.lax.erf(y * INV_SQRT2))   # exact torch GELU
        o_ref[0] = out.astype(o_ref.dtype)


# --------------------------------------------------------------------------
# host-side weight / vector packing
# --------------------------------------------------------------------------
def _build_packed_tap_weights(w_conv, groups, cg_pad, gpp, n_packs, k_pad,
                              dtype):
    """(C, Cg, K) grouped Conv1d weight -> (K_pad, n_packs, 128, 128), each
    pack block-diagonal over `gpp` groups of (Cg_pad, Cg_pad), (in, out)
    oriented, zero-padded taps / groups / channels."""
    _, cg, k_taps = w_conv.shape
    w_perm = jnp.transpose(
        w_conv.astype(jnp.float32).reshape(groups, cg, cg, k_taps),
        (3, 0, 2, 1))                                   # (K, G, Cg_in, Cg_out)
    n_slots = n_packs * gpp
    w_full = jnp.zeros((k_pad, n_slots, cg_pad, cg_pad), jnp.float32)
    w_full = w_full.at[:k_taps, :groups, :cg, :cg].set(w_perm)
    w_full = w_full.reshape(k_pad, n_packs, gpp, cg_pad, cg_pad)
    eye = jnp.eye(gpp, dtype=jnp.float32)
    w_blk = jnp.einsum("kpaij,ab->kpaibj", w_full, eye)  # block-diag per pack
    return w_blk.reshape(k_pad, n_packs, gpp * cg_pad,
                         gpp * cg_pad).astype(dtype)


def _build_dense_tap_weights(w_conv, groups, c_pack, k_pad, dtype):
    """Dense block-diagonal fallback (Cg > 128): (K_pad, 1, C_pack, C_pack)."""
    _, cg, k_taps = w_conv.shape
    w_perm = jnp.transpose(
        w_conv.astype(jnp.float32).reshape(groups, cg, cg, k_taps),
        (3, 0, 2, 1))                                   # (K, G, Cg_in, Cg_out)
    w_dense = jnp.zeros((k_pad, c_pack, c_pack), jnp.float32)
    for gi in range(groups):
        sl = slice(gi * cg, (gi + 1) * cg)
        w_dense = w_dense.at[:k_taps, sl, sl].set(w_perm[:, gi])
    return w_dense.reshape(k_pad, 1, c_pack, c_pack).astype(dtype)


def _pack_channel_vector(v, groups, cg, n_slots, cg_pad):
    vv = v.astype(jnp.float32).reshape(groups, cg)
    vv = jnp.pad(vv, ((0, n_slots - groups), (0, cg_pad - cg)))
    return vv.reshape(1, n_slots * cg_pad)


# --------------------------------------------------------------------------
# wrapper
# --------------------------------------------------------------------------
@functools.partial(
    jax.jit,
    static_argnames=("padding", "groups", "taps_per_step", "t_block",
                     "stream_dtype", "channel_last_io"))
def relative_positional_embedding(x, w_conv, b_conv, ln_gamma, ln_beta, *,
                                  padding, groups, taps_per_step=None,
                                  t_block=256, stream_dtype=jnp.bfloat16,
                                  channel_last_io=False):
    """x: (B, C, T) like the PyTorch module (or (B, T, C) if channel_last_io);
    returns (B, C, T_out) (or (B, T_out, C))."""
    if channel_last_io:
        batch, t, c = x.shape
    else:
        batch, c, t = x.shape
    k_taps = w_conv.shape[-1]
    cg = c // groups
    t_conv = t + 2 * padding - k_taps + 1
    t_out = t_conv - 1                      # LengthCorrection drops last step

    # ---- channel packing: exploit the grouped / block-diagonal structure ----
    if cg <= 128:
        cg_pad = _next_pow2(max(cg, 1))     # divides 128
        gpp = 128 // cg_pad                 # groups per 128-lane pack
        n_packs = (groups + gpp - 1) // gpp
        n_slots = n_packs * gpp
        pack_w = 128
        packed = True
    else:
        # few wide groups: dense block-diagonal fallback (waste <= groups x)
        pack_w = _round_up(c, 128)
        n_packs, gpp, cg_pad, n_slots = 1, groups, cg, groups
        packed = False
    c_pack = n_packs * pack_w

    # ---- tap chunking + generation-aware VMEM budget ----------------------
    stream_isz = jnp.dtype(stream_dtype).itemsize
    out_isz = jnp.dtype(x.dtype).itemsize

    t_blk = min(_round_up(t_block, 8), _round_up(t_out, 8))
    t_out_pad = _round_up(t_out, t_blk)
    n_t_blocks = t_out_pad // t_blk

    vmem_cap = _vmem_capacity_bytes()
    budget = vmem_cap - (8 << 20)           # headroom

    k_pad8 = _round_up(k_taps, 8)
    kc_size = k_pad8 if taps_per_step is None else min(
        _round_up(min(taps_per_step, k_taps), 8), k_pad8)

    def vmem_est(kc, t_in):
        return (2 * t_in * c_pack * stream_isz                     # input
                + 2 * kc * n_packs * pack_w * pack_w * stream_isz  # weights
                + 2 * t_blk * c_pack * out_isz                     # output
                + t_blk * c_pack * 4                               # f32 acc
                + 8 * c_pack * 4                                   # vectors
                + (2 << 20))                                       # slack

    # shrink the tap chunk until the double-buffered weight block fits (v7x).
    while kc_size > 8 and vmem_est(kc_size, t_out_pad + _round_up(
            k_taps, kc_size)) > budget:
        kc_size -= 8
    k_pad = _round_up(k_taps, kc_size)
    n_k_chunks = k_pad // kc_size
    t_in_pad = _round_up(t_out_pad + k_pad, 8)
    vmem_limit = int(min(max(vmem_est(kc_size, t_in_pad), 32 << 20), budget))

    # ---- host-side layout glue --------------------------------------------
    x_cl = x if channel_last_io else jnp.transpose(x, (0, 2, 1))   # (B, T, C)
    if packed:
        x_g = x_cl.reshape(batch, t, groups, cg)
        x_g = jnp.pad(x_g, ((0, 0),
                            (padding, t_in_pad - t - padding),
                            (0, n_slots - groups),
                            (0, cg_pad - cg)))
        x_p = x_g.reshape(batch, t_in_pad, c_pack).astype(stream_dtype)
        w_p = _build_packed_tap_weights(w_conv, groups, cg_pad, gpp, n_packs,
                                        k_pad, stream_dtype)
        b2 = _pack_channel_vector(b_conv, groups, cg, n_slots, cg_pad)
        g2 = _pack_channel_vector(ln_gamma, groups, cg, n_slots, cg_pad)
        be2 = _pack_channel_vector(ln_beta, groups, cg, n_slots, cg_pad)
        msk = _pack_channel_vector(jnp.ones((c,), jnp.float32), groups, cg,
                                   n_slots, cg_pad)
    else:
        x_p = jnp.pad(x_cl, ((0, 0),
                             (padding, t_in_pad - t - padding),
                             (0, c_pack - c))).astype(stream_dtype)
        w_p = _build_dense_tap_weights(w_conv, groups, c_pack, k_pad,
                                       stream_dtype)

        def flat(v):
            return jnp.pad(v.astype(jnp.float32),
                           (0, c_pack - c)).reshape(1, c_pack)

        b2, g2, be2 = flat(b_conv), flat(ln_gamma), flat(ln_beta)
        msk = flat(jnp.ones((c,), jnp.float32))

    kernel = functools.partial(rel_pos_emb_kernel, c_real=c)

    out_cl = pl.pallas_call(
        kernel,
        out_shape=jax.ShapeDtypeStruct((batch, t_out_pad, c_pack), x.dtype),
        grid_spec=pltpu.PrefetchScalarGridSpec(
            num_scalar_prefetch=0,
            grid=(batch, n_t_blocks, n_k_chunks),
            in_specs=[
                # per-batch channel-last input; block index constant over
                # (ti, kc) so it is DMA'd from HBM once per batch.
                # TODO(synk): for very long sequences on v7x, window x per
                # time tile via memory_space=pl.ANY + manual make_async_copy
                # so VMEM residency stays O(t_blk + K).
                pl.BlockSpec((1, t_in_pad, c_pack),
                             lambda b, ti, kc: (b, 0, 0)),
                # tap-chunk weights; when the full (packed, bf16) weight set
                # fits VMEM, n_k_chunks == 1 and this index is constant, so
                # weights are streamed exactly once (no per-time-tile
                # restream).
                pl.BlockSpec((kc_size, n_packs, pack_w, pack_w),
                             lambda b, ti, kc: (kc, 0, 0, 0)),
                pl.BlockSpec((1, c_pack), lambda b, ti, kc: (0, 0)),
                pl.BlockSpec((1, c_pack), lambda b, ti, kc: (0, 0)),
                pl.BlockSpec((1, c_pack), lambda b, ti, kc: (0, 0)),
                pl.BlockSpec((1, c_pack), lambda b, ti, kc: (0, 0)),
            ],
            out_specs=pl.BlockSpec((1, t_blk, c_pack),
                                   lambda b, ti, kc: (b, ti, 0)),
            scratch_shapes=[pltpu.VMEM((t_blk, c_pack), jnp.float32)],
        ),
        compiler_params=pltpu.CompilerParams(
            dimension_semantics=("parallel", "parallel", "arbitrary"),
            vmem_limit_bytes=vmem_limit),
    )(x_p, w_p, b2, g2, be2, msk)

    # unpack channels, drop the padded tail of the time axis
    if packed:
        out_g = out_cl.reshape(batch, t_out_pad, n_slots, cg_pad)
        out_cl = out_g[:, :t_out, :groups, :cg].reshape(batch, t_out, c)
    else:
        out_cl = out_cl[:, :t_out, :c]
    if channel_last_io:
        return out_cl
    return jnp.transpose(out_cl, (0, 2, 1))                   # (B, C, T_out)


# --------------------------------------------------------------------------
# pure-JAX reference (matches the PyTorch forward)
# --------------------------------------------------------------------------
def reference_forward(x, w_conv, b_conv, ln_gamma, ln_beta, padding, groups):
    y = jax.lax.conv_general_dilated(
        x, w_conv, window_strides=(1,), padding=[(padding, padding)],
        dimension_numbers=("NCH", "OIH", "NCH"),
        feature_group_count=groups)
    y = y + b_conv[None, :, None]
    y = y[:, :, :-1]                      # LengthCorrection
    yt = jnp.transpose(y, (0, 2, 1))      # (B, T, C)
    mean = yt.mean(-1, keepdims=True)
    var = ((yt - mean) ** 2).mean(-1, keepdims=True)
    yn = (yt - mean) / jnp.sqrt(var + LN_EPS) * ln_gamma + ln_beta
    yn = jnp.transpose(yn, (0, 2, 1))     # (B, C, T)
    return 0.5 * yn * (1.0 + jax.lax.erf(yn * INV_SQRT2))


if __name__ == "__main__":
    key = jax.random.PRNGKey(0)

    def make_inputs(k, c, cg, ktaps):
        kx, kw, kb, kg, kbe = jax.random.split(k, 5)
        x = jax.random.normal(kx, (2, c, 16), dtype=jnp.float32)
        w = 0.1 * jax.random.normal(kw, (c, cg, ktaps), dtype=jnp.float32)
        b = 0.05 * jax.random.normal(kb, (c,), dtype=jnp.float32)
        g = 1.0 + 0.1 * jax.random.normal(kg, (c,), dtype=jnp.float32)
        be = 0.05 * jax.random.normal(kbe, (c,), dtype=jnp.float32)
        return x, w, b, g, be

    k1, k2 = jax.random.split(key, 2)

    # A) grouped/packed path, chunked taps (2 chunks), 2 time tiles, f32 streams
    x, w, b, g, be = make_inputs(k1, 32, 8, 16)
    ref = reference_forward(x, w, b, g, be, 8, 4)
    out = relative_positional_embedding(
        x, w, b, g, be, padding=8, groups=4,
        taps_per_step=8, t_block=8, stream_dtype=jnp.float32)
    out = jax.block_until_ready(out)
    assert out.shape == (2, 32, 16), out.shape
    err = float(jnp.max(jnp.abs(out - ref)))
    assert err < 2e-4, err

    # B) same shapes, bf16 streaming + VMEM-resident weights (single tap chunk)
    out = relative_positional_embedding(
        x, w, b, g, be, padding=8, groups=4, stream_dtype=jnp.bfloat16)
    out = jax.block_until_ready(out)
    err = float(jnp.max(jnp.abs(out - ref)))
    assert err < 7e-2, err

    # C) wide-group dense fallback (Cg > 128), channel-last I/O, f32 streams
    x, w, b, g, be = make_inputs(k2, 160, 160, 8)
    ref = jnp.transpose(reference_forward(x, w, b, g, be, 4, 1), (0, 2, 1))
    out = relative_positional_embedding(
        jnp.transpose(x, (0, 2, 1)), w, b, g, be, padding=4, groups=1,
        stream_dtype=jnp.float32, channel_last_io=True)
    out = jax.block_until_ready(out)
    assert out.shape == (2, 16, 160), out.shape
    err = float(jnp.max(jnp.abs(out - ref)))
    assert err < 2e-4, err

    print("KERNEL_OK")
</pallas_src>

<mosaic_0001>
module attributes {stable_mosaic.version = 11 : i64} {
  func.func @rel_pos_emb_kernel(%arg0: i32, %arg1: i32, %arg2: i32, %arg3: memref<1x32x128xf32, #tpu.memory_space<vmem>>, %arg4: memref<8x1x128x128xf32, #tpu.memory_space<vmem>>, %arg5: memref<1x128xf32, #tpu.memory_space<vmem>>, %arg6: memref<1x128xf32, #tpu.memory_space<vmem>>, %arg7: memref<1x128xf32, #tpu.memory_space<vmem>>, %arg8: memref<1x128xf32, #tpu.memory_space<vmem>>, %arg9: memref<1x8x128xf32, #tpu.memory_space<vmem>>, %arg10: memref<8x128xf32, #tpu.memory_space<vmem>>) attributes {dimension_semantics = [#tpu.dimension_semantics<parallel>, #tpu.dimension_semantics<parallel>, #tpu.dimension_semantics<arbitrary>], iteration_bounds = array<i64: 2, 2, 2>, scalar_prefetch = 0 : i64, scratch_operands = 1 : i64, tpu.core_type = #tpu.core_type<tc>, window_params = [{transform_indices = @transform_0, window_bounds = array<i64: 1, 32, 128>}, {transform_indices = @transform_1, window_bounds = array<i64: 8, 1, 128, 128>}, {pipeline_mode = #tpu.pipeline_mode<synchronous>, transform_indices = @transform_2, window_bounds = array<i64: 1, 128>}, {pipeline_mode = #tpu.pipeline_mode<synchronous>, transform_indices = @transform_3, window_bounds = array<i64: 1, 128>}, {pipeline_mode = #tpu.pipeline_mode<synchronous>, transform_indices = @transform_4, window_bounds = array<i64: 1, 128>}, {pipeline_mode = #tpu.pipeline_mode<synchronous>, transform_indices = @transform_5, window_bounds = array<i64: 1, 128>}, {transform_indices = @transform_6, window_bounds = array<i64: 1, 8, 128>}]} {
    %c8_i32 = arith.constant 8 : i32
    %0 = arith.muli %arg1, %c8_i32 : i32
    %c8_i32_0 = arith.constant 8 : i32
    %1 = arith.muli %arg2, %c8_i32_0 : i32
    %2 = arith.addi %0, %1 : i32
    %3 = tpu.assume_multiple %2, 8 : i32
    %c0_i32 = arith.constant 0 : i32
    %4 = arith.cmpi eq, %arg2, %c0_i32 : i32
    %5 = arith.extui %4 : i1 to i32
    %c0_i32_1 = arith.constant 0 : i32
    %6 = arith.cmpi ne, %5, %c0_i32_1 : i32
    scf.if %6 {
      %cst_40 = arith.constant 0.000000e+00 : f32
      %55 = vector.broadcast %cst_40 : f32 to vector<8x128xf32>
      %c0_41 = arith.constant 0 : index
      %c0_42 = arith.constant 0 : index
      %56 = vector.load %arg10[%c0_41, %c0_42] : memref<8x128xf32, #tpu.memory_space<vmem>>, vector<8x128xf32>
      tpu.vector_store %arg10[%c0_41, %c0_42], %55 {strides = array<i32>} : memref<8x128xf32, #tpu.memory_space<vmem>>, vector<8x128xf32>,
    } else {
    }
    %c0 = arith.constant 0 : index
    %7 = arith.index_cast %3 : i32 to index
    %c0_2 = arith.constant 0 : index
    %8 = vector.load %arg3[%c0, %7, %c0_2] : memref<1x32x128xf32, #tpu.memory_space<vmem>>, vector<1x16x128xf32>
    %9 = vector.shape_cast %8 : vector<1x16x128xf32> to vector<16x128xf32>
    %10 = vector.extract_strided_slice %9 {offsets = [0, 0], sizes = [8, 128], strides = [1, 1]} : vector<16x128xf32> to vector<8x128xf32>
    %c0_3 = arith.constant 0 : index
    %c0_4 = arith.constant 0 : index
    %c0_5 = arith.constant 0 : index
    %c0_6 = arith.constant 0 : index
    %11 = vector.load %arg4[%c0_3, %c0_4, %c0_5, %c0_6] : memref<8x1x128x128xf32, #tpu.memory_space<vmem>>, vector<1x1x128x128xf32>
    %12 = vector.shape_cast %11 : vector<1x1x128x128xf32> to vector<128x128xf32>
    %cst = arith.constant dense<0.000000e+00> : vector<8x128xf32>
    %13 = tpu.matmul %10, %12, %cst {dimension_numbers = #tpu.dot_dimension_numbers<[1], [0], [0], [1], [0, 0, 1, 1], [], []>} : vector<8x128xf32>, vector<128x128xf32>, vector<8x128xf32> -> vector<8x128xf32>
    %14 = vector.extract_strided_slice %9 {offsets = [1, 0], sizes = [8, 128], strides = [1, 1]} : vector<16x128xf32> to vector<8x128xf32>
    %c1 = arith.constant 1 : index
    %c0_7 = arith.constant 0 : index
    %c0_8 = arith.constant 0 : index
    %c0_9 = arith.constant 0 : index
    %15 = vector.load %arg4[%c1, %c0_7, %c0_8, %c0_9] : memref<8x1x128x128xf32, #tpu.memory_space<vmem>>, vector<1x1x128x128xf32>
    %16 = vector.shape_cast %15 : vector<1x1x128x128xf32> to vector<128x128xf32>
    %cst_10 = arith.constant dense<0.000000e+00> : vector<8x128xf32>
    %17 = tpu.matmul %14, %16, %cst_10 {dimension_numbers = #tpu.dot_dimension_numbers<[1], [0], [0], [1], [0, 0, 1, 1], [], []>} : vector<8x128xf32>, vector<128x128xf32>, vector<8x128xf32> -> vector<8x128xf32>
    %18 = arith.addf %13, %17 : vector<8x128xf32>
    %19 = vector.extract_strided_slice %9 {offsets = [2, 0], sizes = [8, 128], strides = [1, 1]} : vector<16x128xf32> to vector<8x128xf32>
    %c2 = arith.constant 2 : index
    %c0_11 = arith.constant 0 : index
    %c0_12 = arith.constant 0 : index
    %c0_13 = arith.constant 0 : index
    %20 = vector.load %arg4[%c2, %c0_11, %c0_12, %c0_13] : memref<8x1x128x128xf32, #tpu.memory_space<vmem>>, vector<1x1x128x128xf32>
    %21 = vector.shape_cast %20 : vector<1x1x128x128xf32> to vector<128x128xf32>
    %cst_14 = arith.constant dense<0.000000e+00> : vector<8x128xf32>
    %22 = tpu.matmul %19, %21, %cst_14 {dimension_numbers = #tpu.dot_dimension_numbers<[1], [0], [0], [1], [0, 0, 1, 1], [], []>} : vector<8x128xf32>, vector<128x128xf32>, vector<8x128xf32> -> vector<8x128xf32>
    %23 = arith.addf %18, %22 : vector<8x128xf32>
    %24 = vector.extract_strided_slice %9 {offsets = [3, 0], sizes = [8, 128], strides = [1, 1]} : vector<16x128xf32> to vector<8x128xf32>
    %c3 = arith.constant 3 : index
    %c0_15 = arith.constant 0 : index
    %c0_16 = arith.constant 0 : index
    %c0_17 = arith.constant 0 : index
    %25 = vector.load %arg4[%c3, %c0_15, %c0_16, %c0_17] : memref<8x1x128x128xf32, #tpu.memory_space<vmem>>, vector<1x1x128x128xf32>
    %26 = vector.shape_cast %25 : vector<1x1x128x128xf32> to vector<128x128xf32>
    %cst_18 = arith.constant dense<0.000000e+00> : vector<8x128xf32>
    %27 = tpu.matmul %24, %26, %cst_18 {dimension_numbers = #tpu.dot_dimension_numbers<[1], [0], [0], [1], [0, 0, 1, 1], [], []>} : vector<8x128xf32>, vector<128x128xf32>, vector<8x128xf32> -> vector<8x128xf32>
    %28 = arith.addf %23, %27 : vector<8x128xf32>
    %29 = vector.extract_strided_slice %9 {offsets = [4, 0], sizes = [8, 128], strides = [1, 1]} : vector<16x128xf32> to vector<8x128xf32>
    %c4 = arith.constant 4 : index
    %c0_19 = arith.constant 0 : index
    %c0_20 = arith.constant 0 : index
    %c0_21 = arith.constant 0 : index
    %30 = vector.load %arg4[%c4, %c0_19, %c0_20, %c0_21] : memref<8x1x128x128xf32, #tpu.memory_space<vmem>>, vector<1x1x128x128xf32>
    %31 = vector.shape_cast %30 : vector<1x1x128x128xf32> to vector<128x128xf32>
    %cst_22 = arith.constant dense<0.000000e+00> : vector<8x128xf32>
    %32 = tpu.matmul %29, %31, %cst_22 {dimension_numbers = #tpu.dot_dimension_numbers<[1], [0], [0], [1], [0, 0, 1, 1], [], []>} : vector<8x128xf32>, vector<128x128xf32>, vector<8x128xf32> -> vector<8x128xf32>
    %33 = arith.addf %28, %32 : vector<8x128xf32>
    %34 = vector.extract_strided_slice %9 {offsets = [5, 0], sizes = [8, 128], strides = [1, 1]} : vector<16x128xf32> to vector<8x128xf32>
    %c5 = arith.constant 5 : index
    %c0_23 = arith.constant 0 : index
    %c0_24 = arith.constant 0 : index
    %c0_25 = arith.constant 0 : index
    %35 = vector.load %arg4[%c5, %c0_23, %c0_24, %c0_25] : memref<8x1x128x128xf32, #tpu.memory_space<vmem>>, vector<1x1x128x128xf32>
    %36 = vector.shape_cast %35 : vector<1x1x128x128xf32> to vector<128x128xf32>
    %cst_26 = arith.constant dense<0.000000e+00> : vector<8x128xf32>
    %37 = tpu.matmul %34, %36, %cst_26 {dimension_numbers = #tpu.dot_dimension_numbers<[1], [0], [0], [1], [0, 0, 1, 1], [], []>} : vector<8x128xf32>, vector<128x128xf32>, vector<8x128xf32> -> vector<8x128xf32>
    %38 = arith.addf %33, %37 : vector<8x128xf32>
    %39 = vector.extract_strided_slice %9 {offsets = [6, 0], sizes = [8, 128], strides = [1, 1]} : vector<16x128xf32> to vector<8x128xf32>
    %c6 = arith.constant 6 : index
    %c0_27 = arith.constant 0 : index
    %c0_28 = arith.constant 0 : index
    %c0_29 = arith.constant 0 : index
    %40 = vector.load %arg4[%c6, %c0_27, %c0_28, %c0_29] : memref<8x1x128x128xf32, #tpu.memory_space<vmem>>, vector<1x1x128x128xf32>
    %41 = vector.shape_cast %40 : vector<1x1x128x128xf32> to vector<128x128xf32>
    %cst_30 = arith.constant dense<0.000000e+00> : vector<8x128xf32>
    %42 = tpu.matmul %39, %41, %cst_30 {dimension_numbers = #tpu.dot_dimension_numbers<[1], [0], [0], [1], [0, 0, 1, 1], [], []>} : vector<8x128xf32>, vector<128x128xf32>, vector<8x128xf32> -> vector<8x128xf32>
    %43 = arith.addf %38, %42 : vector<8x128xf32>
    %44 = vector.extract_strided_slice %9 {offsets = [7, 0], sizes = [8, 128], strides = [1, 1]} : vector<16x128xf32> to vector<8x128xf32>
    %c7 = arith.constant 7 : index
    %c0_31 = arith.constant 0 : index
    %c0_32 = arith.constant 0 : index
    %c0_33 = arith.constant 0 : index
    %45 = vector.load %arg4[%c7, %c0_31, %c0_32, %c0_33] : memref<8x1x128x128xf32, #tpu.memory_space<vmem>>, vector<1x1x128x128xf32>
    %46 = vector.shape_cast %45 : vector<1x1x128x128xf32> to vector<128x128xf32>
    %cst_34 = arith.constant dense<0.000000e+00> : vector<8x128xf32>
    %47 = tpu.matmul %44, %46, %cst_34 {dimension_numbers = #tpu.dot_dimension_numbers<[1], [0], [0], [1], [0, 0, 1, 1], [], []>} : vector<8x128xf32>, vector<128x128xf32>, vector<8x128xf32> -> vector<8x128xf32>
    %48 = arith.addf %43, %47 : vector<8x128xf32>
    %c0_35 = arith.constant 0 : index
    %c0_36 = arith.constant 0 : index
    %49 = vector.load %arg10[%c0_35, %c0_36] : memref<8x128xf32, #tpu.memory_space<vmem>>, vector<8x128xf32>
    %50 = arith.addf %49, %48 : vector<8x128xf32>
    %c0_37 = arith.constant 0 : index
    %c0_38 = arith.constant 0 : index
    %51 = vector.load %arg10[%c0_37, %c0_38] : memref<8x128xf32, #tpu.memory_space<vmem>>, vector<8x128xf32>
    tpu.vector_store %arg10[%c0_37, %c0_38], %50 {strides = array<i32>} : memref<8x128xf32, #tpu.memory_space<vmem>>, vector<8x128xf32>,
    %c1_i32 = arith.constant 1 : i32
    %52 = arith.cmpi eq, %arg2, %c1_i32 : i32
    %53 = arith.extui %52 : i1 to i32
    %c0_i32_39 = arith.constant 0 : i32
    %54 = arith.cmpi ne, %53, %c0_i32_39 : i32
    scf.if %54 {
      %c0_40 = arith.constant 0 : index
      %c0_41 = arith.constant 0 : index
      %55 = vector.load %arg10[%c0_40, %c0_41] : memref<8x128xf32, #tpu.memory_space<vmem>>, vector<8x128xf32>
      %c0_42 = arith.constant 0 : index
      %c0_43 = arith.constant 0 : index
      %56 = vector.load %arg5[%c0_42, %c0_43] : memref<1x128xf32, #tpu.memory_space<vmem>>, vector<1x128xf32>
      %57 = vector.broadcast %56 : vector<1x128xf32> to vector<8x128xf32>
      %58 = arith.addf %55, %57 : vector<8x128xf32>
      %cst_44 = arith.constant dense<0.000000e+00> : vector<8xf32>
      %59 = vector.multi_reduction <add>, %58, %cst_44 [1] : vector<8x128xf32> to vector<8xf32>
      %60 = vector.shape_cast %59 : vector<8xf32> to vector<8x1xf32>
      %cst_45 = arith.constant 3.125000e-02 : f32
      %61 = vector.broadcast %cst_45 : f32 to vector<8x1xf32>
      %62 = arith.mulf %60, %61 : vector<8x1xf32>
      %63 = vector.broadcast %62 : vector<8x1xf32> to vector<8x128xf32>
      %64 = arith.subf %58, %63 : vector<8x128xf32>
      %c0_46 = arith.constant 0 : index
      %c0_47 = arith.constant 0 : index
      %65 = vector.load %arg8[%c0_46, %c0_47] : memref<1x128xf32, #tpu.memory_space<vmem>>, vector<1x128xf32>
      %66 = vector.broadcast %65 : vector<1x128xf32> to vector<8x128xf32>
      %67 = arith.mulf %64, %66 : vector<8x128xf32>
      %68 = arith.mulf %67, %67 : vector<8x128xf32>
      %cst_48 = arith.constant dense<0.000000e+00> : vector<8xf32>
      %69 = vector.multi_reduction <add>, %68, %cst_48 [1] : vector<8x128xf32> to vector<8xf32>
      %70 = vector.shape_cast %69 : vector<8xf32> to vector<8x1xf32>
      %cst_49 = arith.constant 3.125000e-02 : f32
      %71 = vector.broadcast %cst_49 : f32 to vector<8x1xf32>
      %72 = arith.mulf %70, %71 : vector<8x1xf32>
      %cst_50 = arith.constant 9.99999974E-6 : f32
      %73 = vector.broadcast %cst_50 : f32 to vector<8x1xf32>
      %74 = arith.addf %72, %73 : vector<8x1xf32>
      %75 = math.rsqrt %74 : vector<8x1xf32>
      %76 = vector.broadcast %75 : vector<8x1xf32> to vector<8x128xf32>
      %77 = arith.mulf %67, %76 : vector<8x128xf32>
      %c0_51 = arith.constant 0 : index
      %c0_52 = arith.constant 0 : index
      %78 = vector.load %arg6[%c0_51, %c0_52] : memref<1x128xf32, #tpu.memory_space<vmem>>, vector<1x128xf32>
      %79 = vector.broadcast %78 : vector<1x128xf32> to vector<8x128xf32>
      %80 = arith.mulf %77, %79 : vector<8x128xf32>
      %c0_53 = arith.constant 0 : index
      %c0_54 = arith.constant 0 : index
      %81 = vector.load %arg7[%c0_53, %c0_54] : memref<1x128xf32, #tpu.memory_space<vmem>>, vector<1x128xf32>
      %82 = vector.broadcast %81 : vector<1x128xf32> to vector<8x128xf32>
      %83 = arith.addf %80, %82 : vector<8x128xf32>
      %cst_55 = arith.constant 5.000000e-01 : f32
      %84 = vector.broadcast %cst_55 : f32 to vector<8x128xf32>
      %85 = arith.mulf %84, %83 : vector<8x128xf32>
      %cst_56 = arith.constant 0.707106769 : f32
      %86 = vector.broadcast %cst_56 : f32 to vector<8x128xf32>
      %87 = arith.mulf %83, %86 : vector<8x128xf32>
      %88 = math.erf %87 : vector<8x128xf32>
      %cst_57 = arith.constant 1.000000e+00 : f32
      %89 = vector.broadcast %cst_57 : f32 to vector<8x128xf32>
      %90 = arith.addf %89, %88 : vector<8x128xf32>
      %91 = arith.mulf %85, %90 : vector<8x128xf32>
      %c0_58 = arith.constant 0 : index
      %c0_59 = arith.constant 0 : index
      %c0_60 = arith.constant 0 : index
      %92 = vector.load %arg9[%c0_58, %c0_59, %c0_60] : memref<1x8x128xf32, #tpu.memory_space<vmem>>, vector<1x8x128xf32>
      %93 = vector.shape_cast %92 : vector<1x8x128xf32> to vector<8x128xf32>
      %94 = vector.shape_cast %91 : vector<8x128xf32> to vector<1x8x128xf32>
      tpu.vector_store %arg9[%c0_58, %c0_59, %c0_60], %94 {strides = array<i32>} : memref<1x8x128xf32, #tpu.memory_space<vmem>>, vector<1x8x128xf32>,
    } else {
    }
    return
  }
  func.func @transform_0(%arg0: i32, %arg1: i32, %arg2: i32) -> (i32, i32, i32) {
    %c0_i32 = arith.constant 0 : i32
    %c0_i32_0 = arith.constant 0 : i32
    %c0_i32_1 = arith.constant 0 : i32
    return %arg0, %c0_i32, %c0_i32_0 : i32, i32, i32
  }
  func.func @transform_1(%arg0: i32, %arg1: i32, %arg2: i32) -> (i32, i32, i32, i32) {
    %c0_i32 = arith.constant 0 : i32
    %c0_i32_0 = arith.constant 0 : i32
    %c0_i32_1 = arith.constant 0 : i32
    %c0_i32_2 = arith.constant 0 : i32
    return %arg2, %c0_i32, %c0_i32_0, %c0_i32_1 : i32, i32, i32, i32
  }
  func.func @transform_2(%arg0: i32, %arg1: i32, %arg2: i32) -> (i32, i32) {
    %c0_i32 = arith.constant 0 : i32
    %c0_i32_0 = arith.constant 0 : i32
    %c0_i32_1 = arith.constant 0 : i32
    return %c0_i32, %c0_i32_0 : i32, i32
  }
  func.func @transform_3(%arg0: i32, %arg1: i32, %arg2: i32) -> (i32, i32) {
    %c0_i32 = arith.constant 0 : i32
    %c0_i32_0 = arith.constant 0 : i32
    %c0_i32_1 = arith.constant 0 : i32
    return %c0_i32, %c0_i32_0 : i32, i32
  }
  func.func @transform_4(%arg0: i32, %arg1: i32, %arg2: i32) -> (i32, i32) {
    %c0_i32 = arith.constant 0 : i32
    %c0_i32_0 = arith.constant 0 : i32
    %c0_i32_1 = arith.constant 0 : i32
    return %c0_i32, %c0_i32_0 : i32, i32
  }
  func.func @transform_5(%arg0: i32, %arg1: i32, %arg2: i32) -> (i32, i32) {
    %c0_i32 = arith.constant 0 : i32
    %c0_i32_0 = arith.constant 0 : i32
    %c0_i32_1 = arith.constant 0 : i32
    return %c0_i32, %c0_i32_0 : i32, i32
  }
  func.func @transform_6(%arg0: i32, %arg1: i32, %arg2: i32) -> (i32, i32, i32) {
    %c0_i32 = arith.constant 0 : i32
    %c0_i32_0 = arith.constant 0 : i32
    return %arg0, %arg1, %c0_i32 : i32, i32, i32
  }
}

</mosaic_0001>

<llo_original>
// kernel: relative_positional_embedding.1
$region0: #{relative_positional_embedding.1}
  #allocation0 [shape = 'u32[]', space=smem, size = 0x4, offset = 0x4, fixed_abs, tag = 'smem constant byte address 0x4 - core index']
  #allocation1 [shape = 'u32[144,128]{1,0:T(1,128)}', space=vmem, size = 0x12000, scoped, tag = 'internal scratch']
  #allocation2 [shape = 'f32[8,128]{1,0:T(8,128)}', space=vmem, size = 0x1000, scoped, tag = 'scratch operand']
  %s0 = inlined_call_operand.vmem [shape: f32[2,32,128], index: 0, kind: input, shape index: {}]
  %s1 = inlined_call_operand.vmem [shape: f32[16,1,128,128], index: 1, kind: input, shape index: {}]
  %s2 = inlined_call_operand.vmem [shape: f32[1,128], index: 2, kind: input, shape index: {}]
  %s3 = inlined_call_operand.vmem [shape: f32[1,128], index: 3, kind: input, shape index: {}]
  %s4 = inlined_call_operand.vmem [shape: f32[1,128], index: 4, kind: input, shape index: {}]
  %s5 = inlined_call_operand.vmem [shape: f32[1,128], index: 5, kind: input, shape index: {}]
  %s6 = inlined_call_operand.vmem [shape: f32[2,16,128], index: 6, kind: output, shape index: {}]
  %s7 = sld [smem:[#allocation0]]
  $region65: #{relative_positional_embedding.1} parent=0
    _
  %s9 = ssub.s32 1, %s7
  %s10 = scalar_select 0, %s9, %s7
  loop: start=0, step=1, limit=10
  $region2: #{relative_positional_embedding.1} parent=0 // loop_pre_header
    _
  $region3: #{relative_positional_embedding.1} parent=0 // loop_header
    %s12 = sphi 0, %s16
    %p13 = scmp.ge.s32.totalorder %s12, 10
    %s19 = sphi 0, %s38
    %s20 = sphi 0, %s34
    %s21 = sphi 0, %s30
    %s22 = sphi 0, %s19
    %s23 = sphi 0, %s20
    %s24 = sphi 0, %s21
    %s25 = sphi 0, %s22
    %s26 = sphi 0, %s23
    %s27 = sphi 0, %s24
    %s41 = sphi 0, %s43
    %s44 = sphi 0, %s41
    %s45 = sphi 0, %s44
    %s61 = sphi 0, %s45
    %s67 = sphi 0, %s69
    %s70 = sphi 0, %s67
    %s71 = sphi 0, %s70
    %s87 = sphi 0, %s71
    %s91 = sphi 0, %s91
    %s93 = sphi 0, %s91
    %s94 = sphi 0, %s93
    %s108 = sphi 0, %s94
    %s112 = sphi 0, %s112
    %s114 = sphi 0, %s112
    %s115 = sphi 0, %s114
    %s129 = sphi 0, %s115
    %s133 = sphi 0, %s133
    %s135 = sphi 0, %s133
    %s136 = sphi 0, %s135
    %s150 = sphi 0, %s136
    %s154 = sphi 0, %s154
    %s156 = sphi 0, %s154
    %s157 = sphi 0, %s156
    %s171 = sphi 0, %s157
    %s179 = sphi 0, %s181
    %s182 = sphi 0, %s179
    %s183 = sphi 0, %s182
    %s199 = sphi 0, %s183
  $region4: #{relative_positional_embedding.1} parent=0 // loop_header_branch
    %15 = sbr.rel (%p13) target = $region8
  $region5: #{relative_positional_embedding.1} parent=0 // loop_body
    %s17 = ssub.s32 %s12, 1
    %s18 = ssub.s32 %s12, 2
    %s28 = sadd.s32 1, %s21
    %p29 = scmp.ge.s32.totalorder %s28, 2
    %s30 = scalar_select %p29, 0, %s28
    %s31 = sadd.s32 1, %s20
    %s32 = scalar_select %p29, %s31, %s20
    %p33 = scmp.ge.s32.totalorder %s32, 2
    %s34 = scalar_select %p33, 0, %s32
    %s35 = sadd.s32 1, %s19
    %s36 = scalar_select %p33, %s35, %s19
    %p37 = scmp.ge.s32.totalorder %s36, 2
    %s38 = scalar_select %p37, 0, %s36
    %s39 = ssub.s32 %s19, %s38
    %p40 = scmp.eq.s32.totalorder %s39, 0
    %s42 = sadd.s32 %s41, 1
    %s43 = scalar_select %p40, %s41, %s42
    %p46 = pneg %p40
    %p47 = scmp.eq.s32.totalorder %s12, 7
    %p48 = por %p46, %p47
    %p49 = scmp.ne.s32.totalorder %s41, %s44
    %p50 = scmp.eq.s32.totalorder %s12, 0
    %p51 = por %p49, %p50
    %p52 = scmp.ne.s32.totalorder %s41, %s44
    %p53 = scmp.eq.s32.totalorder %s17, 7
    %p54 = por %p52, %p53
    %p55 = scmp.ne.s32.totalorder %s44, %s45
    %p56 = scmp.eq.s32.totalorder %s17, 0
    %p57 = por %p55, %p56
    %p58 = scmp.ne.s32.totalorder %s44, %s45
    %p59 = scmp.eq.s32.totalorder %s18, 7
    %p60 = por %p58, %p59
    %p62 = scmp.ne.s32.totalorder %s45, %s61
    %p63 = scmp.eq.s32.totalorder %s18, 0
    %p64 = por %p62, %p63
    %s65 = ssub.s32 %s21, %s30
    %p66 = scmp.eq.s32.totalorder %s65, 0
    %s68 = sadd.s32 %s67, 1
    %s69 = scalar_select %p66, %s67, %s68
    %p72 = pneg %p66
    %p73 = scmp.eq.s32.totalorder %s12, 7
    %p74 = por %p72, %p73
    %p75 = scmp.ne.s32.totalorder %s67, %s70
    %p76 = scmp.eq.s32.totalorder %s12, 0
    %p77 = por %p75, %p76
    %p78 = scmp.ne.s32.totalorder %s67, %s70
    %p79 = scmp.eq.s32.totalorder %s17, 7
    %p80 = por %p78, %p79
    %p81 = scmp.ne.s32.totalorder %s70, %s71
    %p82 = scmp.eq.s32.totalorder %s17, 0
    %p83 = por %p81, %p82
    %p84 = scmp.ne.s32.totalorder %s70, %s71
    %p85 = scmp.eq.s32.totalorder %s18, 7
    %p86 = por %p84, %p85
    %p88 = scmp.ne.s32.totalorder %s71, %s87
    %p89 = scmp.eq.s32.totalorder %s18, 0
    %p90 = por %p88, %p89
    %s92 = sadd.s32 %s91, 1
    %p95 = scmp.eq.s32.totalorder %s12, 7
    %p96 = scmp.ne.s32.totalorder %s91, %s93
    %p97 = scmp.eq.s32.totalorder %s12, 0
    %p98 = por %p96, %p97
    %p99 = scmp.ne.s32.totalorder %s91, %s93
    %p100 = scmp.eq.s32.totalorder %s17, 7
    %p101 = por %p99, %p100
    %p102 = scmp.ne.s32.totalorder %s93, %s94
    %p103 = scmp.eq.s32.totalorder %s17, 0
    %p104 = por %p102, %p103
    %p105 = scmp.ne.s32.totalorder %s93, %s94
    %p106 = scmp.eq.s32.totalorder %s18, 7
    %p107 = por %p105, %p106
    %p109 = scmp.ne.s32.totalorder %s94, %s108
    %p110 = scmp.eq.s32.totalorder %s18, 0
    %p111 = por %p109, %p110
    %s113 = sadd.s32 %s112, 1
    %p116 = scmp.eq.s32.totalorder %s12, 7
    %p117 = scmp.ne.s32.totalorder %s112, %s114
    %p118 = scmp.eq.s32.totalorder %s12, 0
    %p119 = por %p117, %p118
    %p120 = scmp.ne.s32.totalorder %s112, %s114
    %p121 = scmp.eq.s32.totalorder %s17, 7
    %p122 = por %p120, %p121
    %p123 = scmp.ne.s32.totalorder %s114, %s115
    %p124 = scmp.eq.s32.totalorder %s17, 0
    %p125 = por %p123, %p124
    %p126 = scmp.ne.s32.totalorder %s114, %s115
    %p127 = scmp.eq.s32.totalorder %s18, 7
    %p128 = por %p126, %p127
    %p130 = scmp.ne.s32.totalorder %s115, %s129
    %p131 = scmp.eq.s32.totalorder %s18, 0
    %p132 = por %p130, %p131
    %s134 = sadd.s32 %s133, 1
    %p137 = scmp.eq.s32.totalorder %s12, 7
    %p138 = scmp.ne.s32.totalorder %s133, %s135
    %p139 = scmp.eq.s32.totalorder %s12, 0
    %p140 = por %p138, %p139
    %p141 = scmp.ne.s32.totalorder %s133, %s135
    %p142 = scmp.eq.s32.totalorder %s17, 7
    %p143 = por %p141, %p142
    %p144 = scmp.ne.s32.totalorder %s135, %s136
    %p145 = scmp.eq.s32.totalorder %s17, 0
    %p146 = por %p144, %p145
    %p147 = scmp.ne.s32.totalorder %s135, %s136
    %p148 = scmp.eq.s32.totalorder %s18, 7
    %p149 = por %p147, %p148
    %p151 = scmp.ne.s32.totalorder %s136, %s150
    %p152 = scmp.eq.s32.totalorder %s18, 0
    %p153 = por %p151, %p152
    %s155 = sadd.s32 %s154, 1
    %p158 = scmp.eq.s32.totalorder %s12, 7
    %p159 = scmp.ne.s32.totalorder %s154, %s156
    %p160 = scmp.eq.s32.totalorder %s12, 0
    %p161 = por %p159, %p160
    %p162 = scmp.ne.s32.totalorder %s154, %s156
    %p163 = scmp.eq.s32.totalorder %s17, 7
    %p164 = por %p162, %p163
    %p165 = scmp.ne.s32.totalorder %s156, %s157
    %p166 = scmp.eq.s32.totalorder %s17, 0
    %p167 = por %p165, %p166
    %p168 = scmp.ne.s32.totalorder %s156, %s157
    %p169 = scmp.eq.s32.totalorder %s18, 7
    %p170 = por %p168, %p169
    %p172 = scmp.ne.s32.totalorder %s157, %s171
    %p173 = scmp.eq.s32.totalorder %s18, 0
    %p174 = por %p172, %p173
    %s175 = ssub.s32 %s19, %s38
    %s176 = ssub.s32 %s20, %s34
    %s177 = sor.u32 %s175, %s176
    %p178 = scmp.eq.s32.totalorder %s177, 0
    %s180 = sadd.s32 %s179, 1
    %s181 = scalar_select %p178, %s179, %s180
    %p184 = pneg %p178
    %p185 = scmp.eq.s32.totalorder %s12, 7
    %p186 = por %p184, %p185
    %p187 = scmp.ne.s32.totalorder %s179, %s182
    %p188 = scmp.eq.s32.totalorder %s12, 0
    %p189 = por %p187, %p188
    %p190 = scmp.ne.s32.totalorder %s179, %s182
    %p191 = scmp.eq.s32.totalorder %s17, 7
    %p192 = por %p190, %p191
    %p193 = scmp.ne.s32.totalorder %s182, %s183
    %p194 = scmp.eq.s32.totalorder %s17, 0
    %p195 = por %p193, %p194
    %p196 = scmp.ne.s32.totalorder %s182, %s183
    %p197 = scmp.eq.s32.totalorder %s18, 7
    %p198 = por %p196, %p197
    %p200 = scmp.ne.s32.totalorder %s183, %s199
    %p201 = scmp.eq.s32.totalorder %s18, 0
    %p202 = por %p200, %p201
    %p203 = scmp.le.s32.totalorder 1, %s12
    %p204 = scmp.lt.s32.totalorder %s12, 9
    %p205 = pnand %p203, %p204
    %p206 = pneg %p205
    // Predicated region
    $region9: #{relative_positional_embedding.1} parent=5 // pred_check
      _
    $region10: #{relative_positional_embedding.1} parent=5 // pred_check_branch
      %208 = sbr.rel (%p205) target = $region12
    $region11: #{relative_positional_embedding.1} parent=5 // pred_region
      %s209 = ssub.s32 %s12, 1
      // Predicated region
      $region13: #{relative_positional_embedding.1} parent=11 // pred_check
        %p210 = pneg %p104
      $region14: #{relative_positional_embedding.1} parent=11 // pred_check_branch
        %212 = sbr.rel (%p210) target = $region16
      $region15: #{relative_positional_embedding.1} parent=11 // pred_region
        _
      $region16: #{relative_positional_embedding.1} parent=11 // pred_fallthru
        _
      // Predicated region
      $region17: #{relative_positional_embedding.1} parent=11 // pred_check
        %p213 = pneg %p125
      $region18: #{relative_positional_embedding.1} parent=11 // pred_check_branch
        %215 = sbr.rel (%p213) target = $region20
      $region19: #{relative_positional_embedding.1} parent=11 // pred_region
        _
      $region20: #{relative_positional_embedding.1} parent=11 // pred_fallthru
        _
      // Predicated region
      $region21: #{relative_positional_embedding.1} parent=11 // pred_check
        %p216 = pneg %p146
      $region22: #{relative_positional_embedding.1} parent=11 // pred_check_branch
        %218 = sbr.rel (%p216) target = $region24
      $region23: #{relative_positional_embedding.1} parent=11 // pred_region
        _
      $region24: #{relative_positional_embedding.1} parent=11 // pred_fallthru
        _
      // Predicated region
      $region25: #{relative_positional_embedding.1} parent=11 // pred_check
        %p219 = pneg %p167
      $region26: #{relative_positional_embedding.1} parent=11 // pred_check_branch
        %221 = sbr.rel (%p219) target = $region28
      $region27: #{relative_positional_embedding.1} parent=11 // pred_region
        _
      $region28: #{relative_positional_embedding.1} parent=11 // pred_fallthru
        _
    $region12: #{relative_positional_embedding.1} parent=5 // pred_fallthru
      _
    %p222 = scmp.lt.s32.totalorder %s12, 8
    // Predicated region
    $region29: #{relative_positional_embedding.1} parent=5 // pred_check
      %p223 = pneg %p222
    $region30: #{relative_positional_embedding.1} parent=5 // pred_check_branch
      %225 = sbr.rel (%p223) target = $region32
    $region31: #{relative_positional_embedding.1} parent=5 // pred_region
      // Predicated region
      $region33: #{relative_positional_embedding.1} parent=31 // pred_check
        %p226 = pneg %p51
      $region34: #{relative_positional_embedding.1} parent=31 // pred_check_branch
        %228 = sbr.rel (%p226) target = $region36
      $region35: #{relative_positional_embedding.1} parent=31 // pred_region
        %p229 = scmp.lt.s32.totalorder %s19, 1
        %s230 = scalar_select %p229, %s19, 1
        %s231 = smul.addr %s230, 4
        %s232 = smul.addr %s231, 8
        %s233 = scalar_lea.vmem %s0, %s232
      $region36: #{relative_positional_embedding.1} parent=31 // pred_fallthru
        _
      // Predicated region
      $region37: #{relative_positional_embedding.1} parent=31 // pred_check
        %p234 = pneg %p77
      $region38: #{relative_positional_embedding.1} parent=31 // pred_check_branch
        %236 = sbr.rel (%p234) target = $region40
      $region39: #{relative_positional_embedding.1} parent=31 // pred_region
        %s237 = smul.u32 8, %s21
        %p238 = scmp.lt.s32.totalorder %s237, 15
        %s239 = scalar_select %p238, %s237, 15
        %s240 = smul.addr %s239, 16
        %s241 = smul.addr %s240, 8
        %s242 = scalar_lea.vmem %s1, %s241
        %s243 = smul.u32 8, %s21
      $region40: #{relative_positional_embedding.1} parent=31 // pred_fallthru
        _
    $region32: #{relative_positional_embedding.1} parent=5 // pred_fallthru
      _
    %p244 = scmp.le.s32.totalorder 1, %s12
    %p245 = scmp.lt.s32.totalorder %s12, 9
    %p246 = pnand %p244, %p245
    %p247 = pneg %p246
    // Predicated region
    $region41: #{relative_positional_embedding.1} parent=5 // pred_check
      _
    $region42: #{relative_positional_embedding.1} parent=5 // pred_check_branch
      %249 = sbr.rel (%p246) target = $region44
    $region43: #{relative_positional_embedding.1} parent=5 // pred_region
      %s250 = ssub.s32 %s12, 1
      %p251 = scmp.lt.s32.totalorder %s22, 1
      %s252 = scalar_select %p251, %s22, 1
      %s253 = smul.addr %s252, 4
      %s254 = smul.addr %s253, 8
      %s255 = scalar_lea.vmem %s0, %s254
      %p256 = pneg %p57
      %p257 = pneg %p54
      %s258 = smul.u32 8, %s24
      %p259 = scmp.lt.s32.totalorder %s258, 15
      %s260 = scalar_select %p259, %s258, 15
      %s261 = smul.addr %s260, 16
      %s262 = smul.addr %s261, 8
      %s263 = scalar_lea.vmem %s1, %s262
      %p264 = pneg %p83
      %p265 = pneg %p80
      %p266 = pneg %p104
      %p267 = pneg %p101
      %p268 = pneg %p125
      %p269 = pneg %p122
      %p270 = pneg %p146
      %p271 = pneg %p143
      %p272 = pneg %p167
      %p273 = pneg %p164
      %p274 = pneg %p195
      %p275 = pneg %p192
      %p276 = scmp.lt.s32.totalorder %s22, 1
      %s277 = scalar_select %p276, %s22, 1
      %p278 = scmp.lt.s32.totalorder %s23, 1
      %s279 = scalar_select %p278, %s23, 1
      %s280 = smul.addr %s277, 2
      %s281 = sadd.s32 %s279, %s280
      %s282 = smul.addr %s281, 8
      %s283 = scalar_lea.vmem %s6, %s282
      %p284 = scmp.lt.s32.totalorder %s22, 1
      %s285 = scalar_select %p284, %s22, 1
      %s286 = smul.addr %s285, 4
      %s287 = smul.addr %s286, 8
      %s288 = scalar_lea.vmem %s0, %s287
      %s289 = smul.u32 8, %s24
      %p290 = scmp.lt.s32.totalorder %s289, 15
      %s291 = scalar_select %p290, %s289, 15
      %s292 = smul.addr %s291, 16
      %s293 = smul.addr %s292, 8
      %s294 = scalar_lea.vmem %s1, %s293
      %s295 = smul.u32 8, %s24
      %p296 = scmp.lt.s32.totalorder %s22, 1
      %s297 = scalar_select %p296, %s22, 1
      %p298 = scmp.lt.s32.totalorder %s23, 1
      %s299 = scalar_select %p298, %s23, 1
      %s300 = smul.addr %s297, 2
      %s301 = sadd.s32 %s299, %s300
      %s302 = smul.addr %s301, 8
      %s303 = scalar_lea.vmem %s6, %s302
      %s304 = smul.u32 %s23, 8
      %s305 = smul.u32 %s24, 8
      %s306 = sadd.s32 %s304, %s305
      %p307 = scmp.eq.s32.totalorder %s24, 0
      // Predicated region
      $region45: #{relative_positional_embedding.1} parent=43 // pred_check
        %p308 = pneg %p307
      $region46: #{relative_positional_embedding.1} parent=43 // pred_check_branch
        %310 = sbr.rel (%p308) target = $region48
      $region47: #{relative_positional_embedding.1} parent=43 // pred_region
        %311 = vst [vmem:[#allocation2] sm:$0xff] 0.0
      $region48: #{relative_positional_embedding.1} parent=43 // pred_fallthru
        _
      %s312 = scalar_lea.vmem %s288, %s306
      %v313 = vld [vmem:[%s312] sm:$0xff]
      %v314 = vld [vmem:[%s312 + $0x8] sm:$0xff]
      %v315 = vld [vmem:[%s294] sm:$0xff]
      %v316 = vld [vmem:[%s294 + $0x8] sm:$0xff]
      %v317 = vld [vmem:[%s294 + $0x10] sm:$0xff]
      %v318 = vld [vmem:[%s294 + $0x18] sm:$0xff]
      %v319 = vld [vmem:[%s294 + $0x20] sm:$0xff]
      %v320 = vld [vmem:[%s294 + $0x28] sm:$0xff]
      %v321 = vld [vmem:[%s294 + $0x30] sm:$0xff]
      %v322 = vld [vmem:[%s294 + $0x38] sm:$0xff]
      %v323 = vld [vmem:[%s294 + $0x40] sm:$0xff]
      %v324 = vld [vmem:[%s294 + $0x48] sm:$0xff]
      %v325 = vld [vmem:[%s294 + $0x50] sm:$0xff]
      %v326 = vld [vmem:[%s294 + $0x58] sm:$0xff]
      %v327 = vld [vmem:[%s294 + $0x60] sm:$0xff]
      %v328 = vld [vmem:[%s294 + $0x68] sm:$0xff]
      %v329 = vld [vmem:[%s294 + $0x70] sm:$0xff]
      %v330 = vld [vmem:[%s294 + $0x78] sm:$0xff]
      %s331 = scalar_lea.vmem %s294, 128
      %v332 = vld [vmem:[%s331] sm:$0xff]
      %v333 = vld [vmem:[%s331 + $0x8] sm:$0xff]
      %v334 = vld [vmem:[%s331 + $0x10] sm:$0xff]
      %v335 = vld [vmem:[%s331 + $0x18] sm:$0xff]
      %v336 = vld [vmem:[%s331 + $0x20] sm:$0xff]
      %v337 = vld [vmem:[%s331 + $0x28] sm:$0xff]
      %v338 = vld [vmem:[%s331 + $0x30] sm:$0xff]
      %v339 = vld [vmem:[%s331 + $0x38] sm:$0xff]
      %v340 = vld [vmem:[%s331 + $0x40] sm:$0xff]
      %v341 = vld [vmem:[%s331 + $0x48] sm:$0xff]
      %v342 = vld [vmem:[%s331 + $0x50] sm:$0xff]
      %v343 = vld [vmem:[%s331 + $0x58] sm:$0xff]
      %v344 = vld [vmem:[%s331 + $0x60] sm:$0xff]
      %v345 = vld [vmem:[%s331 + $0x68] sm:$0xff]
      %v346 = vld [vmem:[%s331 + $0x70] sm:$0xff]
      %v347 = vld [vmem:[%s331 + $0x78] sm:$0xff]
      %vm350 = vcmask 1046528
      %v351 = vrot.slane %v313, 1
      %v352 = vrot.slane %v314, 1
      %v353 = vsel %vm350, %v351, %v352
      %355 = vmatprep.subr.mxu0 0.0
      %356 = vmatpush1.msra.mxu0 %v332
      %357 = vmatprep.subr.mxu0 0.0
      %358 = vmatpush1.msra.mxu0 %v333
      %359 = vmatprep.subr.mxu0 0.0
      %360 = vmatpush1.msra.mxu0 %v334
      %361 = vmatprep.subr.mxu0 0.0
      %362 = vmatpush1.msra.mxu0 %v335
      %363 = vmatprep.subr.mxu0 0.0
      %364 = vmatpush1.msra.mxu0 %v336
      %365 = vmatprep.subr.mxu0 0.0
      %366 = vmatpush1.msra.mxu0 %v337
      %367 = vmatprep.subr.mxu0 0.0
      %368 = vmatpush1.msra.mxu0 %v338
      %369 = vmatprep.subr.mxu0 0.0
      %370 = vmatpush1.msra.mxu0 %v339
      %371 = vmatprep.subr.mxu0 0.0
      %372 = vmatpush1.msra.mxu0 %v340
      %373 = vmatprep.subr.mxu0 0.0
      %374 = vmatpush1.msra.mxu0 %v341
      %375 = vmatprep.subr.mxu0 0.0
      %376 = vmatpush1.msra.mxu0 %v342
      %377 = vmatprep.subr.mxu0 0.0
      %378 = vmatpush1.msra.mxu0 %v343
      %379 = vmatprep.subr.mxu0 0.0
      %380 = vmatpush1.msra.mxu0 %v344
      %381 = vmatprep.subr.mxu0 0.0
      %382 = vmatpush1.msra.mxu0 %v345
      %383 = vmatprep.subr.mxu0 0.0
      %384 = vmatpush1.msra.mxu0 %v346
      %385 = vmatprep.subr.mxu0 0.0
      %386 = vmatpush1.msra.mxu0 %v347
      %387 = vmatprep.subr.mxu0 0.0
      %388 = vmatpush1.msra.mxu0 0.0
      %389 = vmatprep.subr.mxu0 0.0
      %390 = vmatpush1.msra.mxu0 0.0
      %391 = vmatprep.subr.mxu0 0.0
      %392 = vmatpush1.msra.mxu0 0.0
      %393 = vmatprep.subr.mxu0 0.0
      %394 = vmatpush1.msra.mxu0 0.0
      %395 = vmatprep.subr.mxu0 0.0
      %396 = vmatpush1.msra.mxu0 0.0
      %397 = vmatprep.subr.mxu0 0.0
      %398 = vmatpush1.msra.mxu0 0.0
      %399 = vmatprep.subr.mxu0 0.0
      %400 = vmatpush1.msra.mxu0 0.0
      %401 = vmatprep.subr.mxu0 0.0
      %402 = vmatpush1.msra.mxu0 0.0
      %403 = vmatprep.subr.mxu0 0.0
      %404 = vmatpush1.msra.mxu0 0.0
      %405 = vmatprep.subr.mxu0 0.0
      %406 = vmatpush1.msra.mxu0 0.0
      %407 = vmatprep.subr.mxu0 0.0
      %408 = vmatpush1.msra.mxu0 0.0
      %409 = vmatprep.subr.mxu0 0.0
      %410 = vmatpush1.msra.mxu0 0.0
      %411 = vmatprep.subr.mxu0 0.0
      %412 = vmatpush1.msra.mxu0 0.0
      %413 = vmatprep.subr.mxu0 0.0
      %414 = vmatpush1.msra.mxu0 0.0
      %415 = vmatprep.subr.mxu0 0.0
      %416 = vmatpush1.msra.mxu0 0.0
      %417 = vmatprep.subr.mxu0 0.0
      %418 = vmatpush1.msra.mxu0 0.0
      %419 = vmatprep.mubr.f32.mxu0 0.0
      %420 = vmatmul.mubr.f32.gmra.mrb[0].mxu0 %v353
      %v421 = vpop.f32.mrb[0].mxu0
      %v422 = vadd.f32 0.0, %v421
      %v423 = vpop.f32.mrb[0].mxu0
      %424 = vdwg.mxu0
      %425 = vmatprep.subr.mxu0 0.0
      %426 = vmatpush1.msra.mxu0 %v315
      %427 = vmatprep.subr.mxu0 0.0
      %428 = vmatpush1.msra.mxu0 %v316
      %429 = vmatprep.subr.mxu0 0.0
      %430 = vmatpush1.msra.mxu0 %v317
      %431 = vmatprep.subr.mxu0 0.0
      %432 = vmatpush1.msra.mxu0 %v318
      %433 = vmatprep.subr.mxu0 0.0
      %434 = vmatpush1.msra.mxu0 %v319
      %435 = vmatprep.subr.mxu0 0.0
      %436 = vmatpush1.msra.mxu0 %v320
      %437 = vmatprep.subr.mxu0 0.0
      %438 = vmatpush1.msra.mxu0 %v321
      %439 = vmatprep.subr.mxu0 0.0
      %440 = vmatpush1.msra.mxu0 %v322
      %441 = vmatprep.subr.mxu0 0.0
      %442 = vmatpush1.msra.mxu0 %v323
      %443 = vmatprep.subr.mxu0 0.0
      %444 = vmatpush1.msra.mxu0 %v324
      %445 = vmatprep.subr.mxu0 0.0
      %446 = vmatpush1.msra.mxu0 %v325
      %447 = vmatprep.subr.mxu0 0.0
      %448 = vmatpush1.msra.mxu0 %v326
      %449 = vmatprep.subr.mxu0 0.0
      %450 = vmatpush1.msra.mxu0 %v327
      %451 = vmatprep.subr.mxu0 0.0
      %452 = vmatpush1.msra.mxu0 %v328
      %453 = vmatprep.subr.mxu0 0.0
      %454 = vmatpush1.msra.mxu0 %v329
      %455 = vmatprep.subr.mxu0 0.0
      %456 = vmatpush1.msra.mxu0 %v330
      %457 = vmatprep.subr.mxu0 0.0
      %458 = vmatpush1.msra.mxu0 0.0
      %459 = vmatprep.subr.mxu0 0.0
      %460 = vmatpush1.msra.mxu0 0.0
      %461 = vmatprep.subr.mxu0 0.0
      %462 = vmatpush1.msra.mxu0 0.0
      %463 = vmatprep.subr.mxu0 0.0
      %464 = vmatpush1.msra.mxu0 0.0
      %465 = vmatprep.subr.mxu0 0.0
      %466 = vmatpush1.msra.mxu0 0.0
      %467 = vmatprep.subr.mxu0 0.0
      %468 = vmatpush1.msra.mxu0 0.0
      %469 = vmatprep.subr.mxu0 0.0
      %470 = vmatpush1.msra.mxu0 0.0
      %471 = vmatprep.subr.mxu0 0.0
      %472 = vmatpush1.msra.mxu0 0.0
      %473 = vmatprep.subr.mxu0 0.0
      %474 = vmatpush1.msra.mxu0 0.0
      %475 = vmatprep.subr.mxu0 0.0
      %476 = vmatpush1.msra.mxu0 0.0
      %477 = vmatprep.subr.mxu0 0.0
      %478 = vmatpush1.msra.mxu0 0.0
      %479 = vmatprep.subr.mxu0 0.0
      %480 = vmatpush1.msra.mxu0 0.0
      %481 = vmatprep.subr.mxu0 0.0
      %482 = vmatpush1.msra.mxu0 0.0
      %483 = vmatprep.subr.mxu0 0.0
      %484 = vmatpush1.msra.mxu0 0.0
      %485 = vmatprep.subr.mxu0 0.0
      %486 = vmatpush1.msra.mxu0 0.0
      %487 = vmatprep.subr.mxu0 0.0
      %488 = vmatpush1.msra.mxu0 0.0
      %489 = vmatprep.mubr.f32.mxu0 0.0
      %490 = vmatmul.mubr.f32.gmra.mrb[0].mxu0 %v313
      %v491 = vpop.f32.mrb[0].mxu0
      %v492 = vadd.f32 %v422, %v491
      %v493 = vpop.f32.mrb[0].mxu0
      %494 = vdwg.mxu0
      %s495 = scalar_lea.vmem %s294, 256
      %v496 = vld [vmem:[%s495] sm:$0xff]
      %v497 = vld [vmem:[%s495 + $0x8] sm:$0xff]
      %v498 = vld [vmem:[%s495 + $0x10] sm:$0xff]
      %v499 = vld [vmem:[%s495 + $0x18] sm:$0xff]
      %v500 = vld [vmem:[%s495 + $0x20] sm:$0xff]
      %v501 = vld [vmem:[%s495 + $0x28] sm:$0xff]
      %v502 = vld [vmem:[%s495 + $0x30] sm:$0xff]
      %v503 = vld [vmem:[%s495 + $0x38] sm:$0xff]
      %v504 = vld [vmem:[%s495 + $0x40] sm:$0xff]
      %v505 = vld [vmem:[%s495 + $0x48] sm:$0xff]
      %v506 = vld [vmem:[%s495 + $0x50] sm:$0xff]
      %v507 = vld [vmem:[%s495 + $0x58] sm:$0xff]
      %v508 = vld [vmem:[%s495 + $0x60] sm:$0xff]
      %v509 = vld [vmem:[%s495 + $0x68] sm:$0xff]
      %v510 = vld [vmem:[%s495 + $0x70] sm:$0xff]
      %v511 = vld [vmem:[%s495 + $0x78] sm:$0xff]
      %vm512 = vcmask 1045504
      %v513 = vrot.slane %v313, 2
      %v514 = vrot.slane %v314, 2
      %v515 = vsel %vm512, %v513, %v514
      %517 = vmatprep.subr.mxu0 0.0
      %518 = vmatpush1.msra.mxu0 %v496
      %519 = vmatprep.subr.mxu0 0.0
      %520 = vmatpush1.msra.mxu0 %v497
      %521 = vmatprep.subr.mxu0 0.0
      %522 = vmatpush1.msra.mxu0 %v498
      %523 = vmatprep.subr.mxu0 0.0
      %524 = vmatpush1.msra.mxu0 %v499
      %525 = vmatprep.subr.mxu0 0.0
      %526 = vmatpush1.msra.mxu0 %v500
      %527 = vmatprep.subr.mxu0 0.0
      %528 = vmatpush1.msra.mxu0 %v501
      %529 = vmatprep.subr.mxu0 0.0
      %530 = vmatpush1.msra.mxu0 %v502
      %531 = vmatprep.subr.mxu0 0.0
      %532 = vmatpush1.msra.mxu0 %v503
      %533 = vmatprep.subr.mxu0 0.0
      %534 = vmatpush1.msra.mxu0 %v504
      %535 = vmatprep.subr.mxu0 0.0
      %536 = vmatpush1.msra.mxu0 %v505
      %537 = vmatprep.subr.mxu0 0.0
      %538 = vmatpush1.msra.mxu0 %v506
      %539 = vmatprep.subr.mxu0 0.0
      %540 = vmatpush1.msra.mxu0 %v507
      %541 = vmatprep.subr.mxu0 0.0
      %542 = vmatpush1.msra.mxu0 %v508
      %543 = vmatprep.subr.mxu0 0.0
      %544 = vmatpush1.msra.mxu0 %v509
      %545 = vmatprep.subr.mxu0 0.0
      %546 = vmatpush1.msra.mxu0 %v510
      %547 = vmatprep.subr.mxu0 0.0
      %548 = vmatpush1.msra.mxu0 %v511
      %549 = vmatprep.subr.mxu0 0.0
      %550 = vmatpush1.msra.mxu0 0.0
      %551 = vmatprep.subr.mxu0 0.0
      %552 = vmatpush1.msra.mxu0 0.0
      %553 = vmatprep.subr.mxu0 0.0
      %554 = vmatpush1.msra.mxu0 0.0
      %555 = vmatprep.subr.mxu0 0.0
      %556 = vmatpush1.msra.mxu0 0.0
      %557 = vmatprep.subr.mxu0 0.0
      %558 = vmatpush1.msra.mxu0 0.0
      %559 = vmatprep.subr.mxu0 0.0
      %560 = vmatpush1.msra.mxu0 0.0
      %561 = vmatprep.subr.mxu0 0.0
      %562 = vmatpush1.msra.mxu0 0.0
      %563 = vmatprep.subr.mxu0 0.0
      %564 = vmatpush1.msra.mxu0 0.0
      %565 = vmatprep.subr.mxu0 0.0
      %566 = vmatpush1.msra.mxu0 0.0
      %567 = vmatprep.subr.mxu0 0.0
      %568 = vmatpush1.msra.mxu0 0.0
      %569 = vmatprep.subr.mxu0 0.0
      %570 = vmatpush1.msra.mxu0 0.0
      %571 = vmatprep.subr.mxu0 0.0
      %572 = vmatpush1.msra.mxu0 0.0
      %573 = vmatprep.subr.mxu0 0.0
      %574 = vmatpush1.msra.mxu0 0.0
      %575 = vmatprep.subr.mxu0 0.0
      %576 = vmatpush1.msra.mxu0 0.0
      %577 = vmatprep.subr.mxu0 0.0
      %578 = vmatpush1.msra.mxu0 0.0
      %579 = vmatprep.subr.mxu0 0.0
      %580 = vmatpush1.msra.mxu0 0.0
      %581 = vmatprep.mubr.f32.mxu0 0.0
      %582 = vmatmul.mubr.f32.gmra.mrb[0].mxu0 %v515
      %v583 = vpop.f32.mrb[0].mxu0
      %v584 = vadd.f32 0.0, %v583
      %v585 = vpop.f32.mrb[0].mxu0
      %586 = vdwg.mxu0
      %v587 = vadd.f32 %v492, %v584
      %s588 = scalar_lea.vmem %s294, 384
      %v589 = vld [vmem:[%s588] sm:$0xff]
      %v590 = vld [vmem:[%s588 + $0x8] sm:$0xff]
      %v591 = vld [vmem:[%s588 + $0x10] sm:$0xff]
      %v592 = vld [vmem:[%s588 + $0x18] sm:$0xff]
      %v593 = vld [vmem:[%s588 + $0x20] sm:$0xff]
      %v594 = vld [vmem:[%s588 + $0x28] sm:$0xff]
      %v595 = vld [vmem:[%s588 + $0x30] sm:$0xff]
      %v596 = vld [vmem:[%s588 + $0x38] sm:$0xff]
      %v597 = vld [vmem:[%s588 + $0x40] sm:$0xff]
      %v598 = vld [vmem:[%s588 + $0x48] sm:$0xff]
      %v599 = vld [vmem:[%s588 + $0x50] sm:$0xff]
      %v600 = vld [vmem:[%s588 + $0x58] sm:$0xff]
      %v601 = vld [vmem:[%s588 + $0x60] sm:$0xff]
      %v602 = vld [vmem:[%s588 + $0x68] sm:$0xff]
      %v603 = vld [vmem:[%s588 + $0x70] sm:$0xff]
      %v604 = vld [vmem:[%s588 + $0x78] sm:$0xff]
      %vm605 = vcmask 1044480
      %v606 = vrot.slane %v313, 3
      %v607 = vrot.slane %v314, 3
      %v608 = vsel %vm605, %v606, %v607
      %610 = vmatprep.subr.mxu0 0.0
      %611 = vmatpush1.msra.mxu0 %v589
      %612 = vmatprep.subr.mxu0 0.0
      %613 = vmatpush1.msra.mxu0 %v590
      %614 = vmatprep.subr.mxu0 0.0
      %615 = vmatpush1.msra.mxu0 %v591
      %616 = vmatprep.subr.mxu0 0.0
      %617 = vmatpush1.msra.mxu0 %v592
      %618 = vmatprep.subr.mxu0 0.0
      %619 = vmatpush1.msra.mxu0 %v593
      %620 = vmatprep.subr.mxu0 0.0
      %621 = vmatpush1.msra.mxu0 %v594
      %622 = vmatprep.subr.mxu0 0.0
      %623 = vmatpush1.msra.mxu0 %v595
      %624 = vmatprep.subr.mxu0 0.0
      %625 = vmatpush1.msra.mxu0 %v596
      %626 = vmatprep.subr.mxu0 0.0
      %627 = vmatpush1.msra.mxu0 %v597
      %628 = vmatprep.subr.mxu0 0.0
      %629 = vmatpush1.msra.mxu0 %v598
      %630 = vmatprep.subr.mxu0 0.0
      %631 = vmatpush1.msra.mxu0 %v599
      %632 = vmatprep.subr.mxu0 0.0
      %633 = vmatpush1.msra.mxu0 %v600
      %634 = vmatprep.subr.mxu0 0.0
      %635 = vmatpush1.msra.mxu0 %v601
      %636 = vmatprep.subr.mxu0 0.0
      %637 = vmatpush1.msra.mxu0 %v602
      %638 = vmatprep.subr.mxu0 0.0
      %639 = vmatpush1.msra.mxu0 %v603
      %640 = vmatprep.subr.mxu0 0.0
      %641 = vmatpush1.msra.mxu0 %v604
      %642 = vmatprep.subr.mxu0 0.0
      %643 = vmatpush1.msra.mxu0 0.0
      %644 = vmatprep.subr.mxu0 0.0
      %645 = vmatpush1.msra.mxu0 0.0
      %646 = vmatprep.subr.mxu0 0.0
      %647 = vmatpush1.msra.mxu0 0.0
      %648 = vmatprep.subr.mxu0 0.0
      %649 = vmatpush1.msra.mxu0 0.0
      %650 = vmatprep.subr.mxu0 0.0
      %651 = vmatpush1.msra.mxu0 0.0
      %652 = vmatprep.subr.mxu0 0.0
      %653 = vmatpush1.msra.mxu0 0.0
      %654 = vmatprep.subr.mxu0 0.0
      %655 = vmatpush1.msra.mxu0 0.0
      %656 = vmatprep.subr.mxu0 0.0
      %657 = vmatpush1.msra.mxu0 0.0
      %658 = vmatprep.subr.mxu0 0.0
      %659 = vmatpush1.msra.mxu0 0.0
      %660 = vmatprep.subr.mxu0 0.0
      %661 = vmatpush1.msra.mxu0 0.0
      %662 = vmatprep.subr.mxu0 0.0
      %663 = vmatpush1.msra.mxu0 0.0
      %664 = vmatprep.subr.mxu0 0.0
      %665 = vmatpush1.msra.mxu0 0.0
      %666 = vmatprep.subr.mxu0 0.0
      %667 = vmatpush1.msra.mxu0 0.0
      %668 = vmatprep.subr.mxu0 0.0
      %669 = vmatpush1.msra.mxu0 0.0
      %670 = vmatprep.subr.mxu0 0.0
      %671 = vmatpush1.msra.mxu0 0.0
      %672 = vmatprep.subr.mxu0 0.0
      %673 = vmatpush1.msra.mxu0 0.0
      %674 = vmatprep.mubr.f32.mxu0 0.0
      %675 = vmatmul.mubr.f32.gmra.mrb[0].mxu0 %v608
      %v676 = vpop.f32.mrb[0].mxu0
      %v677 = vadd.f32 0.0, %v676
      %v678 = vpop.f32.mrb[0].mxu0
      %679 = vdwg.mxu0
      %v680 = vadd.f32 %v587, %v677
      %s681 = scalar_lea.vmem %s294, 512
      %v682 = vld [vmem:[%s681] sm:$0xff]
      %v683 = vld [vmem:[%s681 + $0x8] sm:$0xff]
      %v684 = vld [vmem:[%s681 + $0x10] sm:$0xff]
      %v685 = vld [vmem:[%s681 + $0x18] sm:$0xff]
      %v686 = vld [vmem:[%s681 + $0x20] sm:$0xff]
      %v687 = vld [vmem:[%s681 + $0x28] sm:$0xff]
      %v688 = vld [vmem:[%s681 + $0x30] sm:$0xff]
      %v689 = vld [vmem:[%s681 + $0x38] sm:$0xff]
      %v690 = vld [vmem:[%s681 + $0x40] sm:$0xff]
      %v691 = vld [vmem:[%s681 + $0x48] sm:$0xff]
      %v692 = vld [vmem:[%s681 + $0x50] sm:$0xff]
      %v693 = vld [vmem:[%s681 + $0x58] sm:$0xff]
      %v694 = vld [vmem:[%s681 + $0x60] sm:$0xff]
      %v695 = vld [vmem:[%s681 + $0x68] sm:$0xff]
      %v696 = vld [vmem:[%s681 + $0x70] sm:$0xff]
      %v697 = vld [vmem:[%s681 + $0x78] sm:$0xff]
      %vm698 = vcmask 1043456
      %v699 = vrot.slane %v313, 4
      %v700 = vrot.slane %v314, 4
      %v701 = vsel %vm698, %v699, %v700
      %703 = vmatprep.subr.mxu0 0.0
      %704 = vmatpush1.msra.mxu0 %v682
      %705 = vmatprep.subr.mxu0 0.0
      %706 = vmatpush1.msra.mxu0 %v683
      %707 = vmatprep.subr.mxu0 0.0
      %708 = vmatpush1.msra.mxu0 %v684
      %709 = vmatprep.subr.mxu0 0.0
      %710 = vmatpush1.msra.mxu0 %v685
      %711 = vmatprep.subr.mxu0 0.0
      %712 = vmatpush1.msra.mxu0 %v686
      %713 = vmatprep.subr.mxu0 0.0
      %714 = vmatpush1.msra.mxu0 %v687
      %715 = vmatprep.subr.mxu0 0.0
      %716 = vmatpush1.msra.mxu0 %v688
      %717 = vmatprep.subr.mxu0 0.0
      %718 = vmatpush1.msra.mxu0 %v689
      %719 = vmatprep.subr.mxu0 0.0
      %720 = vmatpush1.msra.mxu0 %v690
      %721 = vmatprep.subr.mxu0 0.0
      %722 = vmatpush1.msra.mxu0 %v691
      %723 = vmatprep.subr.mxu0 0.0
      %724 = vmatpush1.msra.mxu0 %v692
      %725 = vmatprep.subr.mxu0 0.0
      %726 = vmatpush1.msra.mxu0 %v693
      %727 = vmatprep.subr.mxu0 0.0
      %728 = vmatpush1.msra.mxu0 %v694
      %729 = vmatprep.subr.mxu0 0.0
      %730 = vmatpush1.msra.mxu0 %v695
      %731 = vmatprep.subr.mxu0 0.0
      %732 = vmatpush1.msra.mxu0 %v696
      %733 = vmatprep.subr.mxu0 0.0
      %734 = vmatpush1.msra.mxu0 %v697
      %735 = vmatprep.subr.mxu0 0.0
      %736 = vmatpush1.msra.mxu0 0.0
      %737 = vmatprep.subr.mxu0 0.0
      %738 = vmatpush1.msra.mxu0 0.0
      %739 = vmatprep.subr.mxu0 0.0
      %740 = vmatpush1.msra.mxu0 0.0
      %741 = vmatprep.subr.mxu0 0.0
      %742 = vmatpush1.msra.mxu0 0.0
      %743 = vmatprep.subr.mxu0 0.0
      %744 = vmatpush1.msra.mxu0 0.0
      %745 = vmatprep.subr.mxu0 0.0
      %746 = vmatpush1.msra.mxu0 0.0
      %747 = vmatprep.subr.mxu0 0.0
      %748 = vmatpush1.msra.mxu0 0.0
      %749 = vmatprep.subr.mxu0 0.0
      %750 = vmatpush1.msra.mxu0 0.0
      %751 = vmatprep.subr.mxu0 0.0
      %752 = vmatpush1.msra.mxu0 0.0
      %753 = vmatprep.subr.mxu0 0.0
      %754 = vmatpush1.msra.mxu0 0.0
      %755 = vmatprep.subr.mxu0 0.0
      %756 = vmatpush1.msra.mxu0 0.0
      %757 = vmatprep.subr.mxu0 0.0
      %758 = vmatpush1.msra.mxu0 0.0
      %759 = vmatprep.subr.mxu0 0.0
      %760 = vmatpush1.msra.mxu0 0.0
      %761 = vmatprep.subr.mxu0 0.0
      %762 = vmatpush1.msra.mxu0 0.0
      %763 = vmatprep.subr.mxu0 0.0
      %764 = vmatpush1.msra.mxu0 0.0
      %765 = vmatprep.subr.mxu0 0.0
      %766 = vmatpush1.msra.mxu0 0.0
      %767 = vmatprep.mubr.f32.mxu0 0.0
      %768 = vmatmul.mubr.f32.gmra.mrb[0].mxu0 %v701
      %v769 = vpop.f32.mrb[0].mxu0
      %v770 = vadd.f32 0.0, %v769
      %v771 = vpop.f32.mrb[0].mxu0
      %772 = vdwg.mxu0
      %v773 = vadd.f32 %v680, %v770
      %s774 = scalar_lea.vmem %s294, 640
      %v775 = vld [vmem:[%s774] sm:$0xff]
      %v776 = vld [vmem:[%s774 + $0x8] sm:$0xff]
      %v777 = vld [vmem:[%s774 + $0x10] sm:$0xff]
      %v778 = vld [vmem:[%s774 + $0x18] sm:$0xff]
      %v779 = vld [vmem:[%s774 + $0x20] sm:$0xff]
      %v780 = vld [vmem:[%s774 + $0x28] sm:$0xff]
      %v781 = vld [vmem:[%s774 + $0x30] sm:$0xff]
      %v782 = vld [vmem:[%s774 + $0x38] sm:$0xff]
      %v783 = vld [vmem:[%s774 + $0x40] sm:$0xff]
      %v784 = vld [vmem:[%s774 + $0x48] sm:$0xff]
      %v785 = vld [vmem:[%s774 + $0x50] sm:$0xff]
      %v786 = vld [vmem:[%s774 + $0x58] sm:$0xff]
      %v787 = vld [vmem:[%s774 + $0x60] sm:$0xff]
      %v788 = vld [vmem:[%s774 + $0x68] sm:$0xff]
      %v789 = vld [vmem:[%s774 + $0x70] sm:$0xff]
      %v790 = vld [vmem:[%s774 + $0x78] sm:$0xff]
      %vm791 = vcmask 1042432
      %v792 = vrot.slane %v313, 5
      %v793 = vrot.slane %v314, 5
      %v794 = vsel %vm791, %v792, %v793
      %796 = vmatprep.subr.mxu0 0.0
      %797 = vmatpush1.msra.mxu0 %v775
      %798 = vmatprep.subr.mxu0 0.0
      %799 = vmatpush1.msra.mxu0 %v776
      %800 = vmatprep.subr.mxu0 0.0
      %801 = vmatpush1.msra.mxu0 %v777
      %802 = vmatprep.subr.mxu0 0.0
      %803 = vmatpush1.msra.mxu0 %v778
      %804 = vmatprep.subr.mxu0 0.0
      %805 = vmatpush1.msra.mxu0 %v779
      %806 = vmatprep.subr.mxu0 0.0
      %807 = vmatpush1.msra.mxu0 %v780
      %808 = vmatprep.subr.mxu0 0.0
      %809 = vmatpush1.msra.mxu0 %v781
      %810 = vmatprep.subr.mxu0 0.0
      %811 = vmatpush1.msra.mxu0 %v782
      %812 = vmatprep.subr.mxu0 0.0
      %813 = vmatpush1.msra.mxu0 %v783
      %814 = vmatprep.subr.mxu0 0.0
      %815 = vmatpush1.msra.mxu0 %v784
      %816 = vmatprep.subr.mxu0 0.0
      %817 = vmatpush1.msra.mxu0 %v785
      %818 = vmatprep.subr.mxu0 0.0
      %819 = vmatpush1.msra.mxu0 %v786
      %820 = vmatprep.subr.mxu0 0.0
      %821 = vmatpush1.msra.mxu0 %v787
      %822 = vmatprep.subr.mxu0 0.0
      %823 = vmatpush1.msra.mxu0 %v788
      %824 = vmatprep.subr.mxu0 0.0
      %825 = vmatpush1.msra.mxu0 %v789
      %826 = vmatprep.subr.mxu0 0.0
      %827 = vmatpush1.msra.mxu0 %v790
      %828 = vmatprep.subr.mxu0 0.0
      %829 = vmatpush1.msra.mxu0 0.0
      %830 = vmatprep.subr.mxu0 0.0
      %831 = vmatpush1.msra.mxu0 0.0
      %832 = vmatprep.subr.mxu0 0.0
      %833 = vmatpush1.msra.mxu0 0.0
      %834 = vmatprep.subr.mxu0 0.0
      %835 = vmatpush1.msra.mxu0 0.0
      %836 = vmatprep.subr.mxu0 0.0
      %837 = vmatpush1.msra.mxu0 0.0
      %838 = vmatprep.subr.mxu0 0.0
      %839 = vmatpush1.msra.mxu0 0.0
      %840 = vmatprep.subr.mxu0 0.0
      %841 = vmatpush1.msra.mxu0 0.0
      %842 = vmatprep.subr.mxu0 0.0
      %843 = vmatpush1.msra.mxu0 0.0
      %844 = vmatprep.subr.mxu0 0.0
      %845 = vmatpush1.msra.mxu0 0.0
      %846 = vmatprep.subr.mxu0 0.0
      %847 = vmatpush1.msra.mxu0 0.0
      %848 = vmatprep.subr.mxu0 0.0
      %849 = vmatpush1.msra.mxu0 0.0
      %850 = vmatprep.subr.mxu0 0.0
      %851 = vmatpush1.msra.mxu0 0.0
      %852 = vmatprep.subr.mxu0 0.0
      %853 = vmatpush1.msra.mxu0 0.0
      %854 = vmatprep.subr.mxu0 0.0
      %855 = vmatpush1.msra.mxu0 0.0
      %856 = vmatprep.subr.mxu0 0.0
      %857 = vmatpush1.msra.mxu0 0.0
      %858 = vmatprep.subr.mxu0 0.0
      %859 = vmatpush1.msra.mxu0 0.0
      %860 = vmatprep.mubr.f32.mxu0 0.0
      %861 = vmatmul.mubr.f32.gmra.mrb[0].mxu0 %v794
      %v862 = vpop.f32.mrb[0].mxu0
      %v863 = vadd.f32 0.0, %v862
      %v864 = vpop.f32.mrb[0].mxu0
      %865 = vdwg.mxu0
      %v866 = vadd.f32 %v773, %v863
      %s867 = scalar_lea.vmem %s294, 768
      %v868 = vld [vmem:[%s867] sm:$0xff]
      %v869 = vld [vmem:[%s867 + $0x8] sm:$0xff]
      %v870 = vld [vmem:[%s867 + $0x10] sm:$0xff]
      %v871 = vld [vmem:[%s867 + $0x18] sm:$0xff]
      %v872 = vld [vmem:[%s867 + $0x20] sm:$0xff]
      %v873 = vld [vmem:[%s867 + $0x28] sm:$0xff]
      %v874 = vld [vmem:[%s867 + $0x30] sm:$0xff]
      %v875 = vld [vmem:[%s867 + $0x38] sm:$0xff]
      %v876 = vld [vmem:[%s867 + $0x40] sm:$0xff]
      %v877 = vld [vmem:[%s867 + $0x48] sm:$0xff]
      %v878 = vld [vmem:[%s867 + $0x50] sm:$0xff]
      %v879 = vld [vmem:[%s867 + $0x58] sm:$0xff]
      %v880 = vld [vmem:[%s867 + $0x60] sm:$0xff]
      %v881 = vld [vmem:[%s867 + $0x68] sm:$0xff]
      %v882 = vld [vmem:[%s867 + $0x70] sm:$0xff]
      %v883 = vld [vmem:[%s867 + $0x78] sm:$0xff]
      %vm884 = vcmask 1041408
      %v885 = vrot.slane %v313, 6
      %v886 = vrot.slane %v314, 6
      %v887 = vsel %vm884, %v885, %v886
      %889 = vmatprep.subr.mxu0 0.0
      %890 = vmatpush1.msra.mxu0 %v868
      %891 = vmatprep.subr.mxu0 0.0
      %892 = vmatpush1.msra.mxu0 %v869
      %893 = vmatprep.subr.mxu0 0.0
      %894 = vmatpush1.msra.mxu0 %v870
      %895 = vmatprep.subr.mxu0 0.0
      %896 = vmatpush1.msra.mxu0 %v871
      %897 = vmatprep.subr.mxu0 0.0
      %898 = vmatpush1.msra.mxu0 %v872
      %899 = vmatprep.subr.mxu0 0.0
      %900 = vmatpush1.msra.mxu0 %v873
      %901 = vmatprep.subr.mxu0 0.0
      %902 = vmatpush1.msra.mxu0 %v874
      %903 = vmatprep.subr.mxu0 0.0
      %904 = vmatpush1.msra.mxu0 %v875
      %905 = vmatprep.subr.mxu0 0.0
      %906 = vmatpush1.msra.mxu0 %v876
      %907 = vmatprep.subr.mxu0 0.0
      %908 = vmatpush1.msra.mxu0 %v877
      %909 = vmatprep.subr.mxu0 0.0
      %910 = vmatpush1.msra.mxu0 %v878
      %911 = vmatprep.subr.mxu0 0.0
      %912 = vmatpush1.msra.mxu0 %v879
      %913 = vmatprep.subr.mxu0 0.0
      %914 = vmatpush1.msra.mxu0 %v880
      %915 = vmatprep.subr.mxu0 0.0
      %916 = vmatpush1.msra.mxu0 %v881
      %917 = vmatprep.subr.mxu0 0.0
      %918 = vmatpush1.msra.mxu0 %v882
      %919 = vmatprep.subr.mxu0 0.0
      %920 = vmatpush1.msra.mxu0 %v883
      %921 = vmatprep.subr.mxu0 0.0
      %922 = vmatpush1.msra.mxu0 0.0
      %923 = vmatprep.subr.mxu0 0.0
      %924 = vmatpush1.msra.mxu0 0.0
      %925 = vmatprep.subr.mxu0 0.0
      %926 = vmatpush1.msra.mxu0 0.0
      %927 = vmatprep.subr.mxu0 0.0
      %928 = vmatpush1.msra.mxu0 0.0
      %929 = vmatprep.subr.mxu0 0.0
      %930 = vmatpush1.msra.mxu0 0.0
      %931 = vmatprep.subr.mxu0 0.0
      %932 = vmatpush1.msra.mxu0 0.0
      %933 = vmatprep.subr.mxu0 0.0
      %934 = vmatpush1.msra.mxu0 0.0
      %935 = vmatprep.subr.mxu0 0.0
      %936 = vmatpush1.msra.mxu0 0.0
      %937 = vmatprep.subr.mxu0 0.0
      %938 = vmatpush1.msra.mxu0 0.0
      %939 = vmatprep.subr.mxu0 0.0
      %940 = vmatpush1.msra.mxu0 0.0
      %941 = vmatprep.subr.mxu0 0.0
      %942 = vmatpush1.msra.mxu0 0.0
      %943 = vmatprep.subr.mxu0 0.0
      %944 = vmatpush1.msra.mxu0 0.0
      %945 = vmatprep.subr.mxu0 0.0
      %946 = vmatpush1.msra.mxu0 0.0
      %947 = vmatprep.subr.mxu0 0.0
      %948 = vmatpush1.msra.mxu0 0.0
      %949 = vmatprep.subr.mxu0 0.0
      %950 = vmatpush1.msra.mxu0 0.0
      %951 = vmatprep.subr.mxu0 0.0
      %952 = vmatpush1.msra.mxu0 0.0
      %953 = vmatprep.mubr.f32.mxu0 0.0
      %954 = vmatmul.mubr.f32.gmra.mrb[0].mxu0 %v887
      %v955 = vpop.f32.mrb[0].mxu0
      %v956 = vadd.f32 0.0, %v955
      %v957 = vpop.f32.mrb[0].mxu0
      %958 = vdwg.mxu0
      %v959 = vadd.f32 %v866, %v956
      %s960 = scalar_lea.vmem %s294, 896
      %v961 = vld [vmem:[%s960] sm:$0xff]
      %v962 = vld [vmem:[%s960 + $0x8] sm:$0xff]
      %v963 = vld [vmem:[%s960 + $0x10] sm:$0xff]
      %v964 = vld [vmem:[%s960 + $0x18] sm:$0xff]
      %v965 = vld [vmem:[%s960 + $0x20] sm:$0xff]
      %v966 = vld [vmem:[%s960 + $0x28] sm:$0xff]
      %v967 = vld [vmem:[%s960 + $0x30] sm:$0xff]
      %v968 = vld [vmem:[%s960 + $0x38] sm:$0xff]
      %v969 = vld [vmem:[%s960 + $0x40] sm:$0xff]
      %v970 = vld [vmem:[%s960 + $0x48] sm:$0xff]
      %v971 = vld [vmem:[%s960 + $0x50] sm:$0xff]
      %v972 = vld [vmem:[%s960 + $0x58] sm:$0xff]
      %v973 = vld [vmem:[%s960 + $0x60] sm:$0xff]
      %v974 = vld [vmem:[%s960 + $0x68] sm:$0xff]
      %v975 = vld [vmem:[%s960 + $0x70] sm:$0xff]
      %v976 = vld [vmem:[%s960 + $0x78] sm:$0xff]
      %vm977 = vcmask 1040384
      %v978 = vrot.slane %v313, 7
      %v979 = vrot.slane %v314, 7
      %v980 = vsel %vm977, %v978, %v979
      %982 = vmatprep.subr.mxu0 0.0
      %983 = vmatpush1.msra.mxu0 %v961
      %984 = vmatprep.subr.mxu0 0.0
      %985 = vmatpush1.msra.mxu0 %v962
      %986 = vmatprep.subr.mxu0 0.0
      %987 = vmatpush1.msra.mxu0 %v963
      %988 = vmatprep.subr.mxu0 0.0
      %989 = vmatpush1.msra.mxu0 %v964
      %990 = vmatprep.subr.mxu0 0.0
      %991 = vmatpush1.msra.mxu0 %v965
      %992 = vmatprep.subr.mxu0 0.0
      %993 = vmatpush1.msra.mxu0 %v966
      %994 = vmatprep.subr.mxu0 0.0
      %995 = vmatpush1.msra.mxu0 %v967
      %996 = vmatprep.subr.mxu0 0.0
      %997 = vmatpush1.msra.mxu0 %v968
      %998 = vmatprep.subr.mxu0 0.0
      %999 = vmatpush1.msra.mxu0 %v969
      %1000 = vmatprep.subr.mxu0 0.0
      %1001 = vmatpush1.msra.mxu0 %v970
      %1002 = vmatprep.subr.mxu0 0.0
      %1003 = vmatpush1.msra.mxu0 %v971
      %1004 = vmatprep.subr.mxu0 0.0
      %1005 = vmatpush1.msra.mxu0 %v972
      %1006 = vmatprep.subr.mxu0 0.0
      %1007 = vmatpush1.msra.mxu0 %v973
      %1008 = vmatprep.subr.mxu0 0.0
      %1009 = vmatpush1.msra.mxu0 %v974
      %1010 = vmatprep.subr.mxu0 0.0
      %1011 = vmatpush1.msra.mxu0 %v975
      %1012 = vmatprep.subr.mxu0 0.0
      %1013 = vmatpush1.msra.mxu0 %v976
      %1014 = vmatprep.subr.mxu0 0.0
      %1015 = vmatpush1.msra.mxu0 0.0
      %1016 = vmatprep.subr.mxu0 0.0
      %1017 = vmatpush1.msra.mxu0 0.0
      %1018 = vmatprep.subr.mxu0 0.0
      %1019 = vmatpush1.msra.mxu0 0.0
      %1020 = vmatprep.subr.mxu0 0.0
      %1021 = vmatpush1.msra.mxu0 0.0
      %1022 = vmatprep.subr.mxu0 0.0
      %1023 = vmatpush1.msra.mxu0 0.0
      %1024 = vmatprep.subr.mxu0 0.0
      %1025 = vmatpush1.msra.mxu0 0.0
      %1026 = vmatprep.subr.mxu0 0.0
      %1027 = vmatpush1.msra.mxu0 0.0
      %1028 = vmatprep.subr.mxu0 0.0
      %1029 = vmatpush1.msra.mxu0 0.0
      %1030 = vmatprep.subr.mxu0 0.0
      %1031 = vmatpush1.msra.mxu0 0.0
      %1032 = vmatprep.subr.mxu0 0.0
      %1033 = vmatpush1.msra.mxu0 0.0
      %1034 = vmatprep.subr.mxu0 0.0
      %1035 = vmatpush1.msra.mxu0 0.0
      %1036 = vmatprep.subr.mxu0 0.0
      %1037 = vmatpush1.msra.mxu0 0.0
      %1038 = vmatprep.subr.mxu0 0.0
      %1039 = vmatpush1.msra.mxu0 0.0
      %1040 = vmatprep.subr.mxu0 0.0
      %1041 = vmatpush1.msra.mxu0 0.0
      %1042 = vmatprep.subr.mxu0 0.0
      %1043 = vmatpush1.msra.mxu0 0.0
      %1044 = vmatprep.subr.mxu0 0.0
      %1045 = vmatpush1.msra.mxu0 0.0
      %1046 = vmatprep.mubr.f32.mxu0 0.0
      %1047 = vmatmul.mubr.f32.gmra.mrb[0].mxu0 %v980
      %v1048 = vpop.f32.mrb[0].mxu0
      %v1049 = vadd.f32 0.0, %v1048
      %v1050 = vpop.f32.mrb[0].mxu0
      %1051 = vdwg.mxu0
      %v1052 = vadd.f32 %v959, %v1049
      %v1053 = vld [vmem:[#allocation2] sm:$0xff]
      %v1054 = vadd.f32 %v1053, %v1052
      %1055 = vst [vmem:[#allocation2] sm:$0xff] %v1054
      %p1056 = scmp.eq.s32.totalorder %s24, 1
      // Predicated region
      $region49: #{relative_positional_embedding.1} parent=43 // pred_check
        %p1057 = pneg %p1056
      $region50: #{relative_positional_embedding.1} parent=43 // pred_check_branch
        %1059 = sbr.rel (%p1057) target = $region52
      $region51: #{relative_positional_embedding.1} parent=43 // pred_region
        %v1060 = vld [vmem:[#allocation2] sm:$0xff]
        %v1061 = vld [vmem:[%s2] sm:$0x1]
        %v1063 = vlaneseq
        %v1064 = vshrl.u32 %v1063, 7
        %v1065 = vsub.s32 0, %v1064
        %v1066 = vrot.slane %v1061, %v1065
        %v1068 = vadd.f32 %v1060, %v1066
        %1069 = vadd.xlane.f32.xlu0 %v1068
        %v1070 = vpop.xlane.xlu0 %1069
        %v1071 = vmul.f32 %v1070, 0.03125
        %v1072 = vsub.f32 %v1068, %v1071
        %v1073 = vld [vmem:[%s5] sm:$0x1]
        %v1075 = vlaneseq
        %v1076 = vshrl.u32 %v1075, 7
        %v1077 = vsub.s32 0, %v1076
        %v1078 = vrot.slane %v1073, %v1077
        %v1080 = vmul.f32 %v1072, %v1078
        %v1081 = vmul.f32 %v1080, %v1080
        %1082 = vadd.xlane.f32.xlu0 %v1081
        %v1083 = vpop.xlane.xlu0 %1082
        %v1084 = vmul.f32 %v1083, 0.03125
        %v1085 = vadd.f32 %v1084, 1e-05
        %v1086 = vrsqrt.pop %v1085
        %v1087 = vmul.f32 %v1080, %v1086
        %v1088 = vld [vmem:[%s3] sm:$0x1]
        %v1090 = vlaneseq
        %v1091 = vshrl.u32 %v1090, 7
        %v1092 = vsub.s32 0, %v1091
        %v1093 = vrot.slane %v1088, %v1092
        %v1095 = vmul.f32 %v1087, %v1093
        %v1096 = vld [vmem:[%s4] sm:$0x1]
        %v1098 = vlaneseq
        %v1099 = vshrl.u32 %v1098, 7
        %v1100 = vsub.s32 0, %v1099
        %v1101 = vrot.slane %v1096, %v1100
        %v1103 = vadd.f32 %v1095, %v1101
        %v1104 = vmul.f32 %v1103, 0.5
        %v1105 = vmul.f32 %v1103, 0.70710677
        %v1106 = verf.f32.pop %v1105
        %v1107 = vadd.f32 %v1106, 1.0
        %v1108 = vmul.f32 %v1104, %v1107
        %1109 = vst [vmem:[%s303] sm:$0xff] %v1108
      $region52: #{relative_positional_embedding.1} parent=43 // pred_fallthru
        _
      %p1110 = scmp.lt.s32.totalorder %s22, 1
      %s1111 = scalar_select %p1110, %s22, 1
      %p1112 = scmp.lt.s32.totalorder %s23, 1
      %s1113 = scalar_select %p1112, %s23, 1
      %s1114 = smul.addr %s1111, 2
      %s1115 = sadd.s32 %s1113, %s1114
      %s1116 = smul.addr %s1115, 8
      %s1117 = scalar_lea.vmem %s6, %s1116
      // Predicated region
      $region53: #{relative_positional_embedding.1} parent=43 // pred_check
        %p1118 = pneg %p192
      $region54: #{relative_positional_embedding.1} parent=43 // pred_check_branch
        %1120 = sbr.rel (%p1118) target = $region56
      $region55: #{relative_positional_embedding.1} parent=43 // pred_region
        _
      $region56: #{relative_positional_embedding.1} parent=43 // pred_fallthru
        _
    $region44: #{relative_positional_embedding.1} parent=5 // pred_fallthru
      _
    %p1121 = scmp.le.s32.totalorder 2, %s12
    // Predicated region
    $region57: #{relative_positional_embedding.1} parent=5 // pred_check
      %p1122 = pneg %p1121
    $region58: #{relative_positional_embedding.1} parent=5 // pred_check_branch
      %1124 = sbr.rel (%p1122) target = $region60
    $region59: #{relative_positional_embedding.1} parent=5 // pred_region
      %s1125 = ssub.s32 %s12, 2
      // Predicated region
      $region61: #{relative_positional_embedding.1} parent=59 // pred_check
        %p1126 = pneg %p198
      $region62: #{relative_positional_embedding.1} parent=59 // pred_check_branch
        %1128 = sbr.rel (%p1126) target = $region64
      $region63: #{relative_positional_embedding.1} parent=59 // pred_region
        %p1129 = scmp.lt.s32.totalorder %s25, 1
        %s1130 = scalar_select %p1129, %s25, 1
        %p1131 = scmp.lt.s32.totalorder %s26, 1
        %s1132 = scalar_select %p1131, %s26, 1
        %s1133 = smul.addr %s1130, 2
        %s1134 = sadd.s32 %s1132, %s1133
        %s1135 = smul.addr %s1134, 8
        %s1136 = scalar_lea.vmem %s6, %s1135
      $region64: #{relative_positional_embedding.1} parent=59 // pred_fallthru
        _
    $region60: #{relative_positional_embedding.1} parent=5 // pred_fallthru
      _
  $region6: #{relative_positional_embedding.1} parent=0 // loop_footer
    %s16 = sadd.s32 1, %s12
  $region7: #{relative_positional_embedding.1} parent=0 // loop_footer_branch
    %11 = sbr.rel target = $region3
  $region8: #{relative_positional_embedding.1} parent=0 // loop_exit
    _

</llo_original>
